<compile_context>
chip_gen: v5e
topology: v5e:2x2
jax: 0.10.0
libtpu: 0.0.40
codegen_flags: <defaults>
</compile_context>

<pallas_src>
import functools

import jax
import jax.numpy as jnp
from jax import lax
from jax.experimental import pallas as pl
from jax.experimental.pallas import tpu as pltpu


_STATS_LANES = 128
_LOGIT_CLIP = 18.420680743952367  # log((1-1e-8)/1e-8): clamp(sigmoid(l)) == sigmoid(clip(l))


# ----------------------------- in-kernel math -----------------------------

def _elu(x):
    # F.elu, alpha=1
    return jnp.where(x > 0.0, x, jnp.exp(jnp.minimum(x, 0.0)) - 1.0)


def _softplus(x):
    # F.softplus with threshold 20 (numerically safe)
    return jnp.where(x > 20.0, x, jnp.log(1.0 + jnp.exp(jnp.minimum(x, 20.0))))


# ----------------------------- fused forward kernel -----------------------------

def _vae2_kernel(
    xh_ref, x_ref, xc_ref,          # (TB, D)
    lx_ref, lxc_ref,                # (TB, 2) labels
    me0_ref, me1_ref,               # (3, TB, H) encoder dropout masks (pre-scaled)
    md0_ref, md1_ref,               # (TB, H)    decoder dropout masks (pre-scaled)
    eps_ref,                        # (TB, ZP)   reparameterization noise (zero-padded)
    w1_ref, b1_ref,                 # (D, H) bf16, (1, H) f32
    w2_ref, b2_ref,                 # (H, H), (1, H)
    wms_ref, bms_ref,               # (H, 2*ZP), (1, 2*ZP)  fused, lane-padded [mu|sigma]
    w3_ref, b3_ref,                 # (ZP, H), (1, H)
    w4_ref, b4_ref,                 # (H, H), (1, H)
    w5_ref, b5_ref,                 # (H, D), (1, D)
    y_ref,                          # (TB, D)
    z_ref,                          # (TB, ZP)  lane-dense, sliced to Z in wrapper
    stats_ref,                      # (8, 128)  per-tile partial sums in sublane 0
    *, dim_z, zp,
):
    Z, ZP = dim_z, zp
    f32 = jnp.float32

    def mm(a, w_ref):
        # bf16 operands on the MXU, f32 accumulation.
        return jnp.dot(a.astype(jnp.bfloat16), w_ref[...], preferred_element_type=f32)

    def encode(x_tile, m0, m1):
        h0 = _elu(mm(x_tile, w1_ref) + b1_ref[...]) * m0
        h1 = jnp.tanh(mm(h0, w2_ref) + b2_ref[...]) * m1
        ms = mm(h1, wms_ref) + bms_ref[...]
        mu = ms[:, :ZP]                       # whole-vreg slices (ZP = multiple of 128)
        sg = 1e-6 + _softplus(ms[:, ZP:])
        return mu, sg

    # --------- gaussian MLP encoder: three streams against the resident weights ---------
    mu_hat, sg_hat = encode(xh_ref[...], me0_ref[0], me1_ref[0])   # encoder(x_hat)
    mu_x, sg_x = encode(x_ref[...], me0_ref[1], me1_ref[1])        # encoder(x)
    mu_c, _ = encode(xc_ref[...], me0_ref[2], me1_ref[2])          # encoder(x_comp)

    # --------- reparameterize + bernoulli MLP decoder ---------
    z = mu_x + sg_x * eps_ref[...]                                 # padded lanes stay 0
    d0 = jnp.tanh(mm(z, w3_ref) + b3_ref[...]) * md0_ref[...]
    d1 = _elu(mm(d0, w4_ref) + b4_ref[...]) * md1_ref[...]
    logits = mm(d1, w5_ref) + b5_ref[...]

    # --------- fused clamp(sigmoid) + bernoulli log-likelihood from clipped logits ---------
    lc = jnp.clip(logits, -_LOGIT_CLIP, _LOGIT_CLIP)
    e = jnp.exp(-jnp.abs(lc))                 # single exp on the (TB, D) tensor
    inv = 1.0 / (1.0 + e)
    y = jnp.where(lc >= 0.0, inv, e * inv)    # == clamp(sigmoid(logits), 1e-8, 1-1e-8)
    softplus_lc = jnp.maximum(lc, 0.0) + jnp.log(1.0 + e)
    x = x_ref[...]
    ml_row = jnp.sum(x * lc - softplus_lc, axis=1, keepdims=True)            # (TB,1)

    # --------- losses: per-tile partial sums ---------
    lane_z = lax.broadcasted_iota(jnp.int32, (1, ZP), 1)
    kl_term = mu_hat ** 2 + sg_hat ** 2 - jnp.log(1e-8 + sg_hat ** 2) - 1.0
    kl_term = jnp.where(lane_z < Z, kl_term, 0.0)                            # mask pad lanes
    kl_row = 0.5 * jnp.sum(kl_term, axis=1, keepdims=True)                   # (TB,1)

    vloss_row = jnp.mean((lxc_ref[...] - lx_ref[...]) ** 2, axis=1, keepdims=True)
    lmean_row = jnp.sum((mu_hat - mu_c) ** 2, axis=1, keepdims=True) * (1.0 / Z)

    ml_s = jnp.sum(ml_row, axis=0, keepdims=True)                            # (1,1)
    kl_s = jnp.sum(kl_row, axis=0, keepdims=True)
    l0_s = jnp.sum(lmean_row * (1.0 - vloss_row), axis=0, keepdims=True)
    l1_s = jnp.sum(jnp.maximum(60.0 * vloss_row - lmean_row, 0.0) * vloss_row,
                   axis=0, keepdims=True)

    y_ref[...] = y
    z_ref[...] = z
    lane = lax.broadcasted_iota(jnp.int32, (8, _STATS_LANES), 1)
    sub = lax.broadcasted_iota(jnp.int32, (8, _STATS_LANES), 0)
    row = (jnp.where(lane == 0, ml_s, 0.0) + jnp.where(lane == 1, kl_s, 0.0)
           + jnp.where(lane == 2, l0_s, 0.0) + jnp.where(lane == 3, l1_s, 0.0))
    stats_ref[...] = jnp.where(sub == 0, row, 0.0)


# ----------------------------- host-side wrapper -----------------------------

def init_vae2_params(key, dim_img, n_hidden, dim_z):
    """Deterministic PyTorch-style (uniform +-1/sqrt(fan_in)) init. Weights are [in, out]."""
    dims = [
        ("fc1", dim_img, n_hidden),
        ("fc2", n_hidden, n_hidden),
        ("fc2_mu", n_hidden, dim_z),
        ("fc2_sigma", n_hidden, dim_z),
        ("fc3", dim_z, n_hidden),
        ("fc4", n_hidden, n_hidden),
        ("fc5", n_hidden, dim_img),
    ]
    params = {}
    for name, fan_in, fan_out in dims:
        key, kw, kb = jax.random.split(key, 3)
        bound = 1.0 / (fan_in ** 0.5)
        params[name + "_w"] = jax.random.uniform(
            kw, (fan_in, fan_out), jnp.float32, -bound, bound)
        params[name + "_b"] = jax.random.uniform(
            kb, (1, fan_out), jnp.float32, -bound, bound)
    return params


def vae2_forward(params, x_hat, x, x_comp, label_x, label_x_comp, rng_key,
                 keep_prob=0.9, KLW=5.0, NLOSSW=10.0, loss_type="1", tile_b=128):
    B, D = x_hat.shape
    H = params["fc1_w"].shape[1]
    Z = params["fc2_mu_w"].shape[1]
    ZP = ((Z + 127) // 128) * 128            # lane-pad dim_z to a vreg boundary

    TB = min(B, tile_b)
    assert B % TB == 0 and (TB % 8 == 0 or TB == B), "batch must tile into (8k) rows"
    num_tiles = B // TB

    # ---- host-side randomness (dropout masks pre-scaled, eps zero-padded) ----
    # TODO(synk): random stream differs from torch RNG; on-chip pltpu.prng_* is not
    #             available in interpret mode, so masks/noise come from jax.random.
    k0, k1, k2, k3, k4 = jax.random.split(rng_key, 5)
    kp = float(keep_prob)

    def mask(k, shape):
        if kp >= 1.0:
            return jnp.ones(shape, jnp.float32)
        return (jax.random.uniform(k, shape) < kp).astype(jnp.float32) * (1.0 / kp)

    me0 = mask(k0, (3, B, H))                # encoder h0 dropout, streams [x_hat, x, x_comp]
    me1 = mask(k1, (3, B, H))                # encoder h1 dropout
    md0 = mask(k2, (B, H))                   # decoder h0 dropout
    md1 = mask(k3, (B, H))                   # decoder h1 dropout
    eps = jnp.pad(jax.random.normal(k4, (B, Z), jnp.float32), ((0, 0), (0, ZP - Z)))

    # ---- bf16 MXU weights (biases stay f32), lane-padded mu/sigma head and fc3 ----
    bf16 = jnp.bfloat16
    w1 = params["fc1_w"].astype(bf16); b1 = params["fc1_b"]
    w2 = params["fc2_w"].astype(bf16); b2 = params["fc2_b"]
    wmu = jnp.pad(params["fc2_mu_w"], ((0, 0), (0, ZP - Z)))
    wsg = jnp.pad(params["fc2_sigma_w"], ((0, 0), (0, ZP - Z)))
    wms = jnp.concatenate([wmu, wsg], axis=1).astype(bf16)
    bmu = jnp.pad(params["fc2_mu_b"], ((0, 0), (0, ZP - Z)))
    bsg = jnp.pad(params["fc2_sigma_b"], ((0, 0), (0, ZP - Z)))
    bms = jnp.concatenate([bmu, bsg], axis=1)
    w3 = jnp.pad(params["fc3_w"], ((0, ZP - Z), (0, 0))).astype(bf16); b3 = params["fc3_b"]
    w4 = params["fc4_w"].astype(bf16); b4 = params["fc4_b"]
    w5 = params["fc5_w"].astype(bf16); b5 = params["fc5_b"]

    def row_spec(shape):
        return pl.BlockSpec(shape, lambda i: (i, 0))

    def const_spec(shape):
        return pl.BlockSpec(shape, lambda i: (0, 0))     # weight stays VMEM-resident

    in_specs = [
        row_spec((TB, D)), row_spec((TB, D)), row_spec((TB, D)),
        row_spec((TB, 2)), row_spec((TB, 2)),
        pl.BlockSpec((3, TB, H), lambda i: (0, i, 0)),
        pl.BlockSpec((3, TB, H), lambda i: (0, i, 0)),
        row_spec((TB, H)), row_spec((TB, H)),
        row_spec((TB, ZP)),
        const_spec((D, H)), const_spec((1, H)),
        const_spec((H, H)), const_spec((1, H)),
        const_spec((H, 2 * ZP)), const_spec((1, 2 * ZP)),
        const_spec((ZP, H)), const_spec((1, H)),
        const_spec((H, H)), const_spec((1, H)),
        const_spec((H, D)), const_spec((1, D)),
    ]
    out_specs = (
        row_spec((TB, D)),
        row_spec((TB, ZP)),
        pl.BlockSpec((8, _STATS_LANES), lambda i: (i, 0)),
    )
    out_shape = (
        jax.ShapeDtypeStruct((B, D), jnp.float32),                       # y
        jax.ShapeDtypeStruct((B, ZP), jnp.float32),                      # z (lane-dense)
        jax.ShapeDtypeStruct((num_tiles * 8, _STATS_LANES), jnp.float32),  # partial sums
    )

    kernel = functools.partial(_vae2_kernel, dim_z=Z, zp=ZP)
    y, z_p, stats = pl.pallas_call(
        kernel,
        grid=(num_tiles,),
        in_specs=in_specs,
        out_specs=out_specs,
        out_shape=out_shape,
        compiler_params=pltpu.CompilerParams(
            dimension_semantics=("parallel",),     # v7x: both TCs split the batch tiles
            vmem_limit_bytes=32 << 20,             # TODO(synk): re-derive for dim_img~10k
        ),
    )(x_hat, x, x_comp, label_x, label_x_comp,
      me0, me1, md0, md1, eps,
      w1, b1, w2, b2, wms, bms, w3, b3, w4, b4, w5, b5)

    # ---- finish scalar reductions in XLA (per-tile partial sums -> batch means) ----
    part = stats[0::8, :]                    # sublane 0 of each tile's (8,128) block
    inv_b = 1.0 / B
    mean_ml = jnp.sum(part[:, 0]) * inv_b
    mean_kl = jnp.sum(part[:, 1]) * inv_b
    loss_0 = jnp.sum(part[:, 2]) * inv_b
    loss_1 = jnp.sum(part[:, 3]) * inv_b
    loss = -(KLW * mean_ml - mean_kl)
    if loss_type[0] == "1":
        loss = loss + (loss_1 + loss_0) * NLOSSW
    return y, z_p[:, :Z], loss, mean_ml, mean_kl


if __name__ == "__main__":
    # Small, module-consistent shapes: dim_img=256, n_hidden=128, dim_z=32, batch=8.
    B, DIM_IMG, N_HIDDEN, DIM_Z = 8, 256, 128, 32
    root = jax.random.PRNGKey(0)
    k_params, k_xh, k_x, k_xc, k_lab, k_rng = jax.random.split(root, 6)

    params = init_vae2_params(k_params, DIM_IMG, N_HIDDEN, DIM_Z)

    # Binary-ish feature vectors (the original model consumes 0/1 malware feature vectors).
    x_hat = (jax.random.uniform(k_xh, (B, DIM_IMG)) < 0.3).astype(jnp.float32)
    x = (jax.random.uniform(k_x, (B, DIM_IMG)) < 0.3).astype(jnp.float32)
    x_comp = (jax.random.uniform(k_xc, (B, DIM_IMG)) < 0.3).astype(jnp.float32)

    # One-hot [benign, malicious] labels, as produced by get_label().
    is_mal = (jax.random.uniform(k_lab, (B,)) < 0.5).astype(jnp.float32)
    label_x = jnp.stack([1.0 - is_mal, is_mal], axis=1)
    label_x_comp = jnp.stack([is_mal, 1.0 - is_mal], axis=1)

    fwd = jax.jit(functools.partial(
        vae2_forward, keep_prob=0.9, KLW=5.0, NLOSSW=10.0, loss_type="1"))
    y, z, loss, mean_ml, mean_kl = fwd(params, x_hat, x, x_comp,
                                       label_x, label_x_comp, k_rng)

    jax.block_until_ready((y, z, loss, mean_ml, mean_kl))
    assert y.shape == (B, DIM_IMG) and z.shape == (B, DIM_Z)
    assert bool(jnp.isfinite(loss)) and bool(jnp.isfinite(mean_ml)) and bool(jnp.isfinite(mean_kl))
    print("KERNEL_OK")
</pallas_src>

<mosaic_0001>
module attributes {stable_mosaic.version = 11 : i64} {
  func.func @_vae2_kernel(%arg0: i32, %arg1: memref<8x256xf32, #tpu.memory_space<vmem>>, %arg2: memref<8x256xf32, #tpu.memory_space<vmem>>, %arg3: memref<8x256xf32, #tpu.memory_space<vmem>>, %arg4: memref<8x2xf32, #tpu.memory_space<vmem>>, %arg5: memref<8x2xf32, #tpu.memory_space<vmem>>, %arg6: memref<3x8x128xf32, #tpu.memory_space<vmem>>, %arg7: memref<3x8x128xf32, #tpu.memory_space<vmem>>, %arg8: memref<8x128xf32, #tpu.memory_space<vmem>>, %arg9: memref<8x128xf32, #tpu.memory_space<vmem>>, %arg10: memref<8x128xf32, #tpu.memory_space<vmem>>, %arg11: memref<256x128xbf16, #tpu.memory_space<vmem>>, %arg12: memref<1x128xf32, #tpu.memory_space<vmem>>, %arg13: memref<128x128xbf16, #tpu.memory_space<vmem>>, %arg14: memref<1x128xf32, #tpu.memory_space<vmem>>, %arg15: memref<128x256xbf16, #tpu.memory_space<vmem>>, %arg16: memref<1x256xf32, #tpu.memory_space<vmem>>, %arg17: memref<128x128xbf16, #tpu.memory_space<vmem>>, %arg18: memref<1x128xf32, #tpu.memory_space<vmem>>, %arg19: memref<128x128xbf16, #tpu.memory_space<vmem>>, %arg20: memref<1x128xf32, #tpu.memory_space<vmem>>, %arg21: memref<128x256xbf16, #tpu.memory_space<vmem>>, %arg22: memref<1x256xf32, #tpu.memory_space<vmem>>, %arg23: memref<8x256xf32, #tpu.memory_space<vmem>>, %arg24: memref<8x128xf32, #tpu.memory_space<vmem>>, %arg25: memref<8x128xf32, #tpu.memory_space<vmem>>) attributes {dimension_semantics = [#tpu.dimension_semantics<parallel>], iteration_bounds = array<i64: 1>, scalar_prefetch = 0 : i64, scratch_operands = 0 : i64, tpu.core_type = #tpu.core_type<tc>, window_params = [{transform_indices = @transform_0, window_bounds = array<i64: 8, 256>}, {transform_indices = @transform_1, window_bounds = array<i64: 8, 256>}, {transform_indices = @transform_2, window_bounds = array<i64: 8, 256>}, {transform_indices = @transform_3, window_bounds = array<i64: 8, 2>}, {transform_indices = @transform_4, window_bounds = array<i64: 8, 2>}, {transform_indices = @transform_5, window_bounds = array<i64: 3, 8, 128>}, {transform_indices = @transform_6, window_bounds = array<i64: 3, 8, 128>}, {transform_indices = @transform_7, window_bounds = array<i64: 8, 128>}, {transform_indices = @transform_8, window_bounds = array<i64: 8, 128>}, {transform_indices = @transform_9, window_bounds = array<i64: 8, 128>}, {pipeline_mode = #tpu.pipeline_mode<synchronous>, transform_indices = @transform_10, window_bounds = array<i64: 256, 128>}, {pipeline_mode = #tpu.pipeline_mode<synchronous>, transform_indices = @transform_11, window_bounds = array<i64: 1, 128>}, {pipeline_mode = #tpu.pipeline_mode<synchronous>, transform_indices = @transform_12, window_bounds = array<i64: 128, 128>}, {pipeline_mode = #tpu.pipeline_mode<synchronous>, transform_indices = @transform_13, window_bounds = array<i64: 1, 128>}, {pipeline_mode = #tpu.pipeline_mode<synchronous>, transform_indices = @transform_14, window_bounds = array<i64: 128, 256>}, {pipeline_mode = #tpu.pipeline_mode<synchronous>, transform_indices = @transform_15, window_bounds = array<i64: 1, 256>}, {pipeline_mode = #tpu.pipeline_mode<synchronous>, transform_indices = @transform_16, window_bounds = array<i64: 128, 128>}, {pipeline_mode = #tpu.pipeline_mode<synchronous>, transform_indices = @transform_17, window_bounds = array<i64: 1, 128>}, {pipeline_mode = #tpu.pipeline_mode<synchronous>, transform_indices = @transform_18, window_bounds = array<i64: 128, 128>}, {pipeline_mode = #tpu.pipeline_mode<synchronous>, transform_indices = @transform_19, window_bounds = array<i64: 1, 128>}, {pipeline_mode = #tpu.pipeline_mode<synchronous>, transform_indices = @transform_20, window_bounds = array<i64: 128, 256>}, {pipeline_mode = #tpu.pipeline_mode<synchronous>, transform_indices = @transform_21, window_bounds = array<i64: 1, 256>}, {transform_indices = @transform_22, window_bounds = array<i64: 8, 256>}, {transform_indices = @transform_23, window_bounds = array<i64: 8, 128>}, {transform_indices = @transform_24, window_bounds = array<i64: 8, 128>}]} {
    %c0 = arith.constant 0 : index
    %c0_0 = arith.constant 0 : index
    %0 = vector.load %arg1[%c0, %c0_0] : memref<8x256xf32, #tpu.memory_space<vmem>>, vector<8x256xf32>
    %c0_1 = arith.constant 0 : index
    %c0_2 = arith.constant 0 : index
    %c0_3 = arith.constant 0 : index
    %1 = vector.load %arg6[%c0_1, %c0_2, %c0_3] : memref<3x8x128xf32, #tpu.memory_space<vmem>>, vector<1x8x128xf32>
    %2 = vector.shape_cast %1 : vector<1x8x128xf32> to vector<8x128xf32>
    %c0_4 = arith.constant 0 : index
    %c0_5 = arith.constant 0 : index
    %c0_6 = arith.constant 0 : index
    %3 = vector.load %arg7[%c0_4, %c0_5, %c0_6] : memref<3x8x128xf32, #tpu.memory_space<vmem>>, vector<1x8x128xf32>
    %4 = vector.shape_cast %3 : vector<1x8x128xf32> to vector<8x128xf32>
    %5 = arith.truncf %0 : vector<8x256xf32> to vector<8x256xbf16>
    %c0_7 = arith.constant 0 : index
    %c0_8 = arith.constant 0 : index
    %6 = vector.load %arg11[%c0_7, %c0_8] : memref<256x128xbf16, #tpu.memory_space<vmem>>, vector<256x128xbf16>
    %cst = arith.constant dense<0.000000e+00> : vector<8x128xf32>
    %7 = tpu.matmul %5, %6, %cst {dimension_numbers = #tpu.dot_dimension_numbers<[1], [0], [0], [1], [0, 0, 1, 1], [], []>} : vector<8x256xbf16>, vector<256x128xbf16>, vector<8x128xf32> -> vector<8x128xf32>
    %c0_9 = arith.constant 0 : index
    %c0_10 = arith.constant 0 : index
    %8 = vector.load %arg12[%c0_9, %c0_10] : memref<1x128xf32, #tpu.memory_space<vmem>>, vector<1x128xf32>
    %9 = vector.broadcast %8 : vector<1x128xf32> to vector<8x128xf32>
    %10 = arith.addf %7, %9 : vector<8x128xf32>
    %cst_11 = arith.constant 0.000000e+00 : f32
    %11 = vector.broadcast %cst_11 : f32 to vector<8x128xf32>
    %12 = arith.cmpf ogt, %10, %11 : vector<8x128xf32>
    %cst_12 = arith.constant 0.000000e+00 : f32
    %13 = vector.broadcast %cst_12 : f32 to vector<8x128xf32>
    %14 = arith.minimumf %10, %13 : vector<8x128xf32>
    %15 = math.exp %14 : vector<8x128xf32>
    %cst_13 = arith.constant 1.000000e+00 : f32
    %16 = vector.broadcast %cst_13 : f32 to vector<8x128xf32>
    %17 = arith.subf %15, %16 : vector<8x128xf32>
    %18 = arith.select %12, %10, %17 : vector<8x128xi1>, vector<8x128xf32>
    %19 = arith.mulf %18, %2 : vector<8x128xf32>
    %20 = arith.truncf %19 : vector<8x128xf32> to vector<8x128xbf16>
    %c0_14 = arith.constant 0 : index
    %c0_15 = arith.constant 0 : index
    %21 = vector.load %arg13[%c0_14, %c0_15] : memref<128x128xbf16, #tpu.memory_space<vmem>>, vector<128x128xbf16>
    %cst_16 = arith.constant dense<0.000000e+00> : vector<8x128xf32>
    %22 = tpu.matmul %20, %21, %cst_16 {dimension_numbers = #tpu.dot_dimension_numbers<[1], [0], [0], [1], [0, 0, 1, 1], [], []>} : vector<8x128xbf16>, vector<128x128xbf16>, vector<8x128xf32> -> vector<8x128xf32>
    %c0_17 = arith.constant 0 : index
    %c0_18 = arith.constant 0 : index
    %23 = vector.load %arg14[%c0_17, %c0_18] : memref<1x128xf32, #tpu.memory_space<vmem>>, vector<1x128xf32>
    %24 = vector.broadcast %23 : vector<1x128xf32> to vector<8x128xf32>
    %25 = arith.addf %22, %24 : vector<8x128xf32>
    %26 = math.tanh %25 : vector<8x128xf32>
    %27 = arith.mulf %26, %4 : vector<8x128xf32>
    %28 = arith.truncf %27 : vector<8x128xf32> to vector<8x128xbf16>
    %c0_19 = arith.constant 0 : index
    %c0_20 = arith.constant 0 : index
    %29 = vector.load %arg15[%c0_19, %c0_20] : memref<128x256xbf16, #tpu.memory_space<vmem>>, vector<128x256xbf16>
    %cst_21 = arith.constant dense<0.000000e+00> : vector<8x256xf32>
    %30 = tpu.matmul %28, %29, %cst_21 {dimension_numbers = #tpu.dot_dimension_numbers<[1], [0], [0], [1], [0, 0, 1, 1], [], []>} : vector<8x128xbf16>, vector<128x256xbf16>, vector<8x256xf32> -> vector<8x256xf32>
    %c0_22 = arith.constant 0 : index
    %c0_23 = arith.constant 0 : index
    %31 = vector.load %arg16[%c0_22, %c0_23] : memref<1x256xf32, #tpu.memory_space<vmem>>, vector<1x256xf32>
    %32 = vector.broadcast %31 : vector<1x256xf32> to vector<8x256xf32>
    %33 = arith.addf %30, %32 : vector<8x256xf32>
    %34 = vector.extract_strided_slice %33 {offsets = [0, 0], sizes = [8, 128], strides = [1, 1]} : vector<8x256xf32> to vector<8x128xf32>
    %35 = vector.extract_strided_slice %33 {offsets = [0, 128], sizes = [8, 128], strides = [1, 1]} : vector<8x256xf32> to vector<8x128xf32>
    %cst_24 = arith.constant 2.000000e+01 : f32
    %36 = vector.broadcast %cst_24 : f32 to vector<8x128xf32>
    %37 = arith.cmpf ogt, %35, %36 : vector<8x128xf32>
    %cst_25 = arith.constant 2.000000e+01 : f32
    %38 = vector.broadcast %cst_25 : f32 to vector<8x128xf32>
    %39 = arith.minimumf %35, %38 : vector<8x128xf32>
    %40 = math.exp %39 : vector<8x128xf32>
    %cst_26 = arith.constant 1.000000e+00 : f32
    %41 = vector.broadcast %cst_26 : f32 to vector<8x128xf32>
    %42 = arith.addf %41, %40 : vector<8x128xf32>
    %43 = math.log %42 : vector<8x128xf32>
    %44 = arith.select %37, %35, %43 : vector<8x128xi1>, vector<8x128xf32>
    %cst_27 = arith.constant 9.99999997E-7 : f32
    %45 = vector.broadcast %cst_27 : f32 to vector<8x128xf32>
    %46 = arith.addf %45, %44 : vector<8x128xf32>
    %c0_28 = arith.constant 0 : index
    %c0_29 = arith.constant 0 : index
    %47 = vector.load %arg2[%c0_28, %c0_29] : memref<8x256xf32, #tpu.memory_space<vmem>>, vector<8x256xf32>
    %c1 = arith.constant 1 : index
    %c0_30 = arith.constant 0 : index
    %c0_31 = arith.constant 0 : index
    %48 = vector.load %arg6[%c1, %c0_30, %c0_31] : memref<3x8x128xf32, #tpu.memory_space<vmem>>, vector<1x8x128xf32>
    %49 = vector.shape_cast %48 : vector<1x8x128xf32> to vector<8x128xf32>
    %c1_32 = arith.constant 1 : index
    %c0_33 = arith.constant 0 : index
    %c0_34 = arith.constant 0 : index
    %50 = vector.load %arg7[%c1_32, %c0_33, %c0_34] : memref<3x8x128xf32, #tpu.memory_space<vmem>>, vector<1x8x128xf32>
    %51 = vector.shape_cast %50 : vector<1x8x128xf32> to vector<8x128xf32>
    %52 = arith.truncf %47 : vector<8x256xf32> to vector<8x256xbf16>
    %c0_35 = arith.constant 0 : index
    %c0_36 = arith.constant 0 : index
    %53 = vector.load %arg11[%c0_35, %c0_36] : memref<256x128xbf16, #tpu.memory_space<vmem>>, vector<256x128xbf16>
    %cst_37 = arith.constant dense<0.000000e+00> : vector<8x128xf32>
    %54 = tpu.matmul %52, %53, %cst_37 {dimension_numbers = #tpu.dot_dimension_numbers<[1], [0], [0], [1], [0, 0, 1, 1], [], []>} : vector<8x256xbf16>, vector<256x128xbf16>, vector<8x128xf32> -> vector<8x128xf32>
    %c0_38 = arith.constant 0 : index
    %c0_39 = arith.constant 0 : index
    %55 = vector.load %arg12[%c0_38, %c0_39] : memref<1x128xf32, #tpu.memory_space<vmem>>, vector<1x128xf32>
    %56 = vector.broadcast %55 : vector<1x128xf32> to vector<8x128xf32>
    %57 = arith.addf %54, %56 : vector<8x128xf32>
    %cst_40 = arith.constant 0.000000e+00 : f32
    %58 = vector.broadcast %cst_40 : f32 to vector<8x128xf32>
    %59 = arith.cmpf ogt, %57, %58 : vector<8x128xf32>
    %cst_41 = arith.constant 0.000000e+00 : f32
    %60 = vector.broadcast %cst_41 : f32 to vector<8x128xf32>
    %61 = arith.minimumf %57, %60 : vector<8x128xf32>
    %62 = math.exp %61 : vector<8x128xf32>
    %cst_42 = arith.constant 1.000000e+00 : f32
    %63 = vector.broadcast %cst_42 : f32 to vector<8x128xf32>
    %64 = arith.subf %62, %63 : vector<8x128xf32>
    %65 = arith.select %59, %57, %64 : vector<8x128xi1>, vector<8x128xf32>
    %66 = arith.mulf %65, %49 : vector<8x128xf32>
    %67 = arith.truncf %66 : vector<8x128xf32> to vector<8x128xbf16>
    %c0_43 = arith.constant 0 : index
    %c0_44 = arith.constant 0 : index
    %68 = vector.load %arg13[%c0_43, %c0_44] : memref<128x128xbf16, #tpu.memory_space<vmem>>, vector<128x128xbf16>
    %cst_45 = arith.constant dense<0.000000e+00> : vector<8x128xf32>
    %69 = tpu.matmul %67, %68, %cst_45 {dimension_numbers = #tpu.dot_dimension_numbers<[1], [0], [0], [1], [0, 0, 1, 1], [], []>} : vector<8x128xbf16>, vector<128x128xbf16>, vector<8x128xf32> -> vector<8x128xf32>
    %c0_46 = arith.constant 0 : index
    %c0_47 = arith.constant 0 : index
    %70 = vector.load %arg14[%c0_46, %c0_47] : memref<1x128xf32, #tpu.memory_space<vmem>>, vector<1x128xf32>
    %71 = vector.broadcast %70 : vector<1x128xf32> to vector<8x128xf32>
    %72 = arith.addf %69, %71 : vector<8x128xf32>
    %73 = math.tanh %72 : vector<8x128xf32>
    %74 = arith.mulf %73, %51 : vector<8x128xf32>
    %75 = arith.truncf %74 : vector<8x128xf32> to vector<8x128xbf16>
    %c0_48 = arith.constant 0 : index
    %c0_49 = arith.constant 0 : index
    %76 = vector.load %arg15[%c0_48, %c0_49] : memref<128x256xbf16, #tpu.memory_space<vmem>>, vector<128x256xbf16>
    %cst_50 = arith.constant dense<0.000000e+00> : vector<8x256xf32>
    %77 = tpu.matmul %75, %76, %cst_50 {dimension_numbers = #tpu.dot_dimension_numbers<[1], [0], [0], [1], [0, 0, 1, 1], [], []>} : vector<8x128xbf16>, vector<128x256xbf16>, vector<8x256xf32> -> vector<8x256xf32>
    %c0_51 = arith.constant 0 : index
    %c0_52 = arith.constant 0 : index
    %78 = vector.load %arg16[%c0_51, %c0_52] : memref<1x256xf32, #tpu.memory_space<vmem>>, vector<1x256xf32>
    %79 = vector.broadcast %78 : vector<1x256xf32> to vector<8x256xf32>
    %80 = arith.addf %77, %79 : vector<8x256xf32>
    %81 = vector.extract_strided_slice %80 {offsets = [0, 0], sizes = [8, 128], strides = [1, 1]} : vector<8x256xf32> to vector<8x128xf32>
    %82 = vector.extract_strided_slice %80 {offsets = [0, 128], sizes = [8, 128], strides = [1, 1]} : vector<8x256xf32> to vector<8x128xf32>
    %cst_53 = arith.constant 2.000000e+01 : f32
    %83 = vector.broadcast %cst_53 : f32 to vector<8x128xf32>
    %84 = arith.cmpf ogt, %82, %83 : vector<8x128xf32>
    %cst_54 = arith.constant 2.000000e+01 : f32
    %85 = vector.broadcast %cst_54 : f32 to vector<8x128xf32>
    %86 = arith.minimumf %82, %85 : vector<8x128xf32>
    %87 = math.exp %86 : vector<8x128xf32>
    %cst_55 = arith.constant 1.000000e+00 : f32
    %88 = vector.broadcast %cst_55 : f32 to vector<8x128xf32>
    %89 = arith.addf %88, %87 : vector<8x128xf32>
    %90 = math.log %89 : vector<8x128xf32>
    %91 = arith.select %84, %82, %90 : vector<8x128xi1>, vector<8x128xf32>
    %cst_56 = arith.constant 9.99999997E-7 : f32
    %92 = vector.broadcast %cst_56 : f32 to vector<8x128xf32>
    %93 = arith.addf %92, %91 : vector<8x128xf32>
    %c0_57 = arith.constant 0 : index
    %c0_58 = arith.constant 0 : index
    %94 = vector.load %arg3[%c0_57, %c0_58] : memref<8x256xf32, #tpu.memory_space<vmem>>, vector<8x256xf32>
    %c2 = arith.constant 2 : index
    %c0_59 = arith.constant 0 : index
    %c0_60 = arith.constant 0 : index
    %95 = vector.load %arg6[%c2, %c0_59, %c0_60] : memref<3x8x128xf32, #tpu.memory_space<vmem>>, vector<1x8x128xf32>
    %96 = vector.shape_cast %95 : vector<1x8x128xf32> to vector<8x128xf32>
    %c2_61 = arith.constant 2 : index
    %c0_62 = arith.constant 0 : index
    %c0_63 = arith.constant 0 : index
    %97 = vector.load %arg7[%c2_61, %c0_62, %c0_63] : memref<3x8x128xf32, #tpu.memory_space<vmem>>, vector<1x8x128xf32>
    %98 = vector.shape_cast %97 : vector<1x8x128xf32> to vector<8x128xf32>
    %99 = arith.truncf %94 : vector<8x256xf32> to vector<8x256xbf16>
    %c0_64 = arith.constant 0 : index
    %c0_65 = arith.constant 0 : index
    %100 = vector.load %arg11[%c0_64, %c0_65] : memref<256x128xbf16, #tpu.memory_space<vmem>>, vector<256x128xbf16>
    %cst_66 = arith.constant dense<0.000000e+00> : vector<8x128xf32>
    %101 = tpu.matmul %99, %100, %cst_66 {dimension_numbers = #tpu.dot_dimension_numbers<[1], [0], [0], [1], [0, 0, 1, 1], [], []>} : vector<8x256xbf16>, vector<256x128xbf16>, vector<8x128xf32> -> vector<8x128xf32>
    %c0_67 = arith.constant 0 : index
    %c0_68 = arith.constant 0 : index
    %102 = vector.load %arg12[%c0_67, %c0_68] : memref<1x128xf32, #tpu.memory_space<vmem>>, vector<1x128xf32>
    %103 = vector.broadcast %102 : vector<1x128xf32> to vector<8x128xf32>
    %104 = arith.addf %101, %103 : vector<8x128xf32>
    %cst_69 = arith.constant 0.000000e+00 : f32
    %105 = vector.broadcast %cst_69 : f32 to vector<8x128xf32>
    %106 = arith.cmpf ogt, %104, %105 : vector<8x128xf32>
    %cst_70 = arith.constant 0.000000e+00 : f32
    %107 = vector.broadcast %cst_70 : f32 to vector<8x128xf32>
    %108 = arith.minimumf %104, %107 : vector<8x128xf32>
    %109 = math.exp %108 : vector<8x128xf32>
    %cst_71 = arith.constant 1.000000e+00 : f32
    %110 = vector.broadcast %cst_71 : f32 to vector<8x128xf32>
    %111 = arith.subf %109, %110 : vector<8x128xf32>
    %112 = arith.select %106, %104, %111 : vector<8x128xi1>, vector<8x128xf32>
    %113 = arith.mulf %112, %96 : vector<8x128xf32>
    %114 = arith.truncf %113 : vector<8x128xf32> to vector<8x128xbf16>
    %c0_72 = arith.constant 0 : index
    %c0_73 = arith.constant 0 : index
    %115 = vector.load %arg13[%c0_72, %c0_73] : memref<128x128xbf16, #tpu.memory_space<vmem>>, vector<128x128xbf16>
    %cst_74 = arith.constant dense<0.000000e+00> : vector<8x128xf32>
    %116 = tpu.matmul %114, %115, %cst_74 {dimension_numbers = #tpu.dot_dimension_numbers<[1], [0], [0], [1], [0, 0, 1, 1], [], []>} : vector<8x128xbf16>, vector<128x128xbf16>, vector<8x128xf32> -> vector<8x128xf32>
    %c0_75 = arith.constant 0 : index
    %c0_76 = arith.constant 0 : index
    %117 = vector.load %arg14[%c0_75, %c0_76] : memref<1x128xf32, #tpu.memory_space<vmem>>, vector<1x128xf32>
    %118 = vector.broadcast %117 : vector<1x128xf32> to vector<8x128xf32>
    %119 = arith.addf %116, %118 : vector<8x128xf32>
    %120 = math.tanh %119 : vector<8x128xf32>
    %121 = arith.mulf %120, %98 : vector<8x128xf32>
    %122 = arith.truncf %121 : vector<8x128xf32> to vector<8x128xbf16>
    %c0_77 = arith.constant 0 : index
    %c0_78 = arith.constant 0 : index
    %123 = vector.load %arg15[%c0_77, %c0_78] : memref<128x256xbf16, #tpu.memory_space<vmem>>, vector<128x256xbf16>
    %cst_79 = arith.constant dense<0.000000e+00> : vector<8x256xf32>
    %124 = tpu.matmul %122, %123, %cst_79 {dimension_numbers = #tpu.dot_dimension_numbers<[1], [0], [0], [1], [0, 0, 1, 1], [], []>} : vector<8x128xbf16>, vector<128x256xbf16>, vector<8x256xf32> -> vector<8x256xf32>
    %c0_80 = arith.constant 0 : index
    %c0_81 = arith.constant 0 : index
    %125 = vector.load %arg16[%c0_80, %c0_81] : memref<1x256xf32, #tpu.memory_space<vmem>>, vector<1x256xf32>
    %126 = vector.broadcast %125 : vector<1x256xf32> to vector<8x256xf32>
    %127 = arith.addf %124, %126 : vector<8x256xf32>
    %128 = vector.extract_strided_slice %127 {offsets = [0, 0], sizes = [8, 128], strides = [1, 1]} : vector<8x256xf32> to vector<8x128xf32>
    %c0_82 = arith.constant 0 : index
    %c0_83 = arith.constant 0 : index
    %129 = vector.load %arg10[%c0_82, %c0_83] : memref<8x128xf32, #tpu.memory_space<vmem>>, vector<8x128xf32>
    %130 = arith.mulf %93, %129 : vector<8x128xf32>
    %131 = arith.addf %81, %130 : vector<8x128xf32>
    %132 = arith.truncf %131 : vector<8x128xf32> to vector<8x128xbf16>
    %c0_84 = arith.constant 0 : index
    %c0_85 = arith.constant 0 : index
    %133 = vector.load %arg17[%c0_84, %c0_85] : memref<128x128xbf16, #tpu.memory_space<vmem>>, vector<128x128xbf16>
    %cst_86 = arith.constant dense<0.000000e+00> : vector<8x128xf32>
    %134 = tpu.matmul %132, %133, %cst_86 {dimension_numbers = #tpu.dot_dimension_numbers<[1], [0], [0], [1], [0, 0, 1, 1], [], []>} : vector<8x128xbf16>, vector<128x128xbf16>, vector<8x128xf32> -> vector<8x128xf32>
    %c0_87 = arith.constant 0 : index
    %c0_88 = arith.constant 0 : index
    %135 = vector.load %arg18[%c0_87, %c0_88] : memref<1x128xf32, #tpu.memory_space<vmem>>, vector<1x128xf32>
    %136 = vector.broadcast %135 : vector<1x128xf32> to vector<8x128xf32>
    %137 = arith.addf %134, %136 : vector<8x128xf32>
    %138 = math.tanh %137 : vector<8x128xf32>
    %c0_89 = arith.constant 0 : index
    %c0_90 = arith.constant 0 : index
    %139 = vector.load %arg8[%c0_89, %c0_90] : memref<8x128xf32, #tpu.memory_space<vmem>>, vector<8x128xf32>
    %140 = arith.mulf %138, %139 : vector<8x128xf32>
    %141 = arith.truncf %140 : vector<8x128xf32> to vector<8x128xbf16>
    %c0_91 = arith.constant 0 : index
    %c0_92 = arith.constant 0 : index
    %142 = vector.load %arg19[%c0_91, %c0_92] : memref<128x128xbf16, #tpu.memory_space<vmem>>, vector<128x128xbf16>
    %cst_93 = arith.constant dense<0.000000e+00> : vector<8x128xf32>
    %143 = tpu.matmul %141, %142, %cst_93 {dimension_numbers = #tpu.dot_dimension_numbers<[1], [0], [0], [1], [0, 0, 1, 1], [], []>} : vector<8x128xbf16>, vector<128x128xbf16>, vector<8x128xf32> -> vector<8x128xf32>
    %c0_94 = arith.constant 0 : index
    %c0_95 = arith.constant 0 : index
    %144 = vector.load %arg20[%c0_94, %c0_95] : memref<1x128xf32, #tpu.memory_space<vmem>>, vector<1x128xf32>
    %145 = vector.broadcast %144 : vector<1x128xf32> to vector<8x128xf32>
    %146 = arith.addf %143, %145 : vector<8x128xf32>
    %cst_96 = arith.constant 0.000000e+00 : f32
    %147 = vector.broadcast %cst_96 : f32 to vector<8x128xf32>
    %148 = arith.cmpf ogt, %146, %147 : vector<8x128xf32>
    %cst_97 = arith.constant 0.000000e+00 : f32
    %149 = vector.broadcast %cst_97 : f32 to vector<8x128xf32>
    %150 = arith.minimumf %146, %149 : vector<8x128xf32>
    %151 = math.exp %150 : vector<8x128xf32>
    %cst_98 = arith.constant 1.000000e+00 : f32
    %152 = vector.broadcast %cst_98 : f32 to vector<8x128xf32>
    %153 = arith.subf %151, %152 : vector<8x128xf32>
    %154 = arith.select %148, %146, %153 : vector<8x128xi1>, vector<8x128xf32>
    %c0_99 = arith.constant 0 : index
    %c0_100 = arith.constant 0 : index
    %155 = vector.load %arg9[%c0_99, %c0_100] : memref<8x128xf32, #tpu.memory_space<vmem>>, vector<8x128xf32>
    %156 = arith.mulf %154, %155 : vector<8x128xf32>
    %157 = arith.truncf %156 : vector<8x128xf32> to vector<8x128xbf16>
    %c0_101 = arith.constant 0 : index
    %c0_102 = arith.constant 0 : index
    %158 = vector.load %arg21[%c0_101, %c0_102] : memref<128x256xbf16, #tpu.memory_space<vmem>>, vector<128x256xbf16>
    %cst_103 = arith.constant dense<0.000000e+00> : vector<8x256xf32>
    %159 = tpu.matmul %157, %158, %cst_103 {dimension_numbers = #tpu.dot_dimension_numbers<[1], [0], [0], [1], [0, 0, 1, 1], [], []>} : vector<8x128xbf16>, vector<128x256xbf16>, vector<8x256xf32> -> vector<8x256xf32>
    %c0_104 = arith.constant 0 : index
    %c0_105 = arith.constant 0 : index
    %160 = vector.load %arg22[%c0_104, %c0_105] : memref<1x256xf32, #tpu.memory_space<vmem>>, vector<1x256xf32>
    %161 = vector.broadcast %160 : vector<1x256xf32> to vector<8x256xf32>
    %162 = arith.addf %159, %161 : vector<8x256xf32>
    %cst_106 = arith.constant -18.420681 : f32
    %cst_107 = arith.constant 18.420681 : f32
    %163 = vector.broadcast %cst_106 : f32 to vector<8x256xf32>
    %164 = arith.maximumf %163, %162 : vector<8x256xf32>
    %165 = vector.broadcast %cst_107 : f32 to vector<8x256xf32>
    %166 = arith.minimumf %165, %164 : vector<8x256xf32>
    %167 = math.absf %166 : vector<8x256xf32>
    %cst_108 = arith.constant 0.000000e+00 : f32
    %168 = vector.broadcast %cst_108 : f32 to vector<8x256xf32>
    %169 = arith.subf %168, %167 : vector<8x256xf32>
    %170 = math.exp %169 : vector<8x256xf32>
    %cst_109 = arith.constant 1.000000e+00 : f32
    %171 = vector.broadcast %cst_109 : f32 to vector<8x256xf32>
    %172 = arith.addf %171, %170 : vector<8x256xf32>
    %cst_110 = arith.constant 1.000000e+00 : f32
    %173 = vector.broadcast %cst_110 : f32 to vector<8x256xf32>
    %174 = arith.divf %173, %172 : vector<8x256xf32>
    %cst_111 = arith.constant 0.000000e+00 : f32
    %175 = vector.broadcast %cst_111 : f32 to vector<8x256xf32>
    %176 = arith.cmpf oge, %166, %175 : vector<8x256xf32>
    %177 = arith.mulf %170, %174 : vector<8x256xf32>
    %178 = arith.select %176, %174, %177 : vector<8x256xi1>, vector<8x256xf32>
    %cst_112 = arith.constant 0.000000e+00 : f32
    %179 = vector.broadcast %cst_112 : f32 to vector<8x256xf32>
    %180 = arith.maximumf %166, %179 : vector<8x256xf32>
    %cst_113 = arith.constant 1.000000e+00 : f32
    %181 = vector.broadcast %cst_113 : f32 to vector<8x256xf32>
    %182 = arith.addf %181, %170 : vector<8x256xf32>
    %183 = math.log %182 : vector<8x256xf32>
    %184 = arith.addf %180, %183 : vector<8x256xf32>
    %c0_114 = arith.constant 0 : index
    %c0_115 = arith.constant 0 : index
    %185 = vector.load %arg2[%c0_114, %c0_115] : memref<8x256xf32, #tpu.memory_space<vmem>>, vector<8x256xf32>
    %186 = arith.mulf %185, %166 : vector<8x256xf32>
    %187 = arith.subf %186, %184 : vector<8x256xf32>
    %cst_116 = arith.constant dense<0.000000e+00> : vector<8xf32>
    %188 = vector.multi_reduction <add>, %187, %cst_116 [1] : vector<8x256xf32> to vector<8xf32>
    %189 = vector.shape_cast %188 : vector<8xf32> to vector<8x1xf32>
    %190 = tpu.iota {dimensions = array<i32: 1>} : vector<1x128xi32>
    %191 = arith.mulf %34, %34 : vector<8x128xf32>
    %192 = arith.mulf %46, %46 : vector<8x128xf32>
    %193 = arith.addf %191, %192 : vector<8x128xf32>
    %194 = arith.mulf %46, %46 : vector<8x128xf32>
    %cst_117 = arith.constant 9.99999993E-9 : f32
    %195 = vector.broadcast %cst_117 : f32 to vector<8x128xf32>
    %196 = arith.addf %195, %194 : vector<8x128xf32>
    %197 = math.log %196 : vector<8x128xf32>
    %198 = arith.subf %193, %197 : vector<8x128xf32>
    %cst_118 = arith.constant 1.000000e+00 : f32
    %199 = vector.broadcast %cst_118 : f32 to vector<8x128xf32>
    %200 = arith.subf %198, %199 : vector<8x128xf32>
    %c32_i32 = arith.constant 32 : i32
    %201 = vector.broadcast %c32_i32 : i32 to vector<1x128xi32>
    %202 = arith.cmpi slt, %190, %201 : vector<1x128xi32>
    %cst_119 = arith.constant 0.000000e+00 : f32
    %203 = vector.shape_cast %202 : vector<1x128xi1> to vector<1x128xi1>
    %204 = vector.broadcast %203 : vector<1x128xi1> to vector<8x128xi1>
    %205 = vector.broadcast %cst_119 : f32 to vector<8x128xf32>
    %206 = arith.select %204, %200, %205 : vector<8x128xi1>, vector<8x128xf32>
    %cst_120 = arith.constant dense<0.000000e+00> : vector<8xf32>
    %207 = vector.multi_reduction <add>, %206, %cst_120 [1] : vector<8x128xf32> to vector<8xf32>
    %208 = vector.shape_cast %207 : vector<8xf32> to vector<8x1xf32>
    %cst_121 = arith.constant 5.000000e-01 : f32
    %209 = vector.broadcast %cst_121 : f32 to vector<8x1xf32>
    %210 = arith.mulf %209, %208 : vector<8x1xf32>
    %c0_122 = arith.constant 0 : index
    %c0_123 = arith.constant 0 : index
    %211 = vector.load %arg5[%c0_122, %c0_123] : memref<8x2xf32, #tpu.memory_space<vmem>>, vector<8x2xf32>
    %c0_124 = arith.constant 0 : index
    %c0_125 = arith.constant 0 : index
    %212 = vector.load %arg4[%c0_124, %c0_125] : memref<8x2xf32, #tpu.memory_space<vmem>>, vector<8x2xf32>
    %213 = arith.subf %211, %212 : vector<8x2xf32>
    %214 = arith.mulf %213, %213 : vector<8x2xf32>
    %cst_126 = arith.constant dense<0.000000e+00> : vector<8xf32>
    %215 = vector.multi_reduction <add>, %214, %cst_126 [1] : vector<8x2xf32> to vector<8xf32>
    %216 = vector.shape_cast %215 : vector<8xf32> to vector<8x1xf32>
    %cst_127 = arith.constant 2.000000e+00 : f32
    %217 = vector.broadcast %cst_127 : f32 to vector<8x1xf32>
    %218 = arith.divf %216, %217 : vector<8x1xf32>
    %219 = arith.subf %34, %128 : vector<8x128xf32>
    %220 = arith.mulf %219, %219 : vector<8x128xf32>
    %cst_128 = arith.constant dense<0.000000e+00> : vector<8xf32>
    %221 = vector.multi_reduction <add>, %220, %cst_128 [1] : vector<8x128xf32> to vector<8xf32>
    %222 = vector.shape_cast %221 : vector<8xf32> to vector<8x1xf32>
    %cst_129 = arith.constant 3.125000e-02 : f32
    %223 = vector.broadcast %cst_129 : f32 to vector<8x1xf32>
    %224 = arith.mulf %222, %223 : vector<8x1xf32>
    %cst_130 = arith.constant dense<0.000000e+00> : vector<1xf32>
    %225 = vector.multi_reduction <add>, %189, %cst_130 [0] : vector<8x1xf32> to vector<1xf32>
    %226 = vector.shape_cast %225 : vector<1xf32> to vector<1x1xf32>
    %cst_131 = arith.constant dense<0.000000e+00> : vector<1xf32>
    %227 = vector.multi_reduction <add>, %210, %cst_131 [0] : vector<8x1xf32> to vector<1xf32>
    %228 = vector.shape_cast %227 : vector<1xf32> to vector<1x1xf32>
    %cst_132 = arith.constant 1.000000e+00 : f32
    %229 = vector.broadcast %cst_132 : f32 to vector<8x1xf32>
    %230 = arith.subf %229, %218 : vector<8x1xf32>
    %231 = arith.mulf %224, %230 : vector<8x1xf32>
    %cst_133 = arith.constant dense<0.000000e+00> : vector<1xf32>
    %232 = vector.multi_reduction <add>, %231, %cst_133 [0] : vector<8x1xf32> to vector<1xf32>
    %233 = vector.shape_cast %232 : vector<1xf32> to vector<1x1xf32>
    %cst_134 = arith.constant 6.000000e+01 : f32
    %234 = vector.broadcast %cst_134 : f32 to vector<8x1xf32>
    %235 = arith.mulf %234, %218 : vector<8x1xf32>
    %236 = arith.subf %235, %224 : vector<8x1xf32>
    %cst_135 = arith.constant 0.000000e+00 : f32
    %237 = vector.broadcast %cst_135 : f32 to vector<8x1xf32>
    %238 = arith.maximumf %236, %237 : vector<8x1xf32>
    %239 = arith.mulf %238, %218 : vector<8x1xf32>
    %cst_136 = arith.constant dense<0.000000e+00> : vector<1xf32>
    %240 = vector.multi_reduction <add>, %239, %cst_136 [0] : vector<8x1xf32> to vector<1xf32>
    %241 = vector.shape_cast %240 : vector<1xf32> to vector<1x1xf32>
    %c0_137 = arith.constant 0 : index
    %c0_138 = arith.constant 0 : index
    %242 = vector.load %arg23[%c0_137, %c0_138] : memref<8x256xf32, #tpu.memory_space<vmem>>, vector<8x256xf32>
    tpu.vector_store %arg23[%c0_137, %c0_138], %178 {strides = array<i32>} : memref<8x256xf32, #tpu.memory_space<vmem>>, vector<8x256xf32>,
    %c0_139 = arith.constant 0 : index
    %c0_140 = arith.constant 0 : index
    %243 = vector.load %arg24[%c0_139, %c0_140] : memref<8x128xf32, #tpu.memory_space<vmem>>, vector<8x128xf32>
    tpu.vector_store %arg24[%c0_139, %c0_140], %131 {strides = array<i32>} : memref<8x128xf32, #tpu.memory_space<vmem>>, vector<8x128xf32>,
    %244 = tpu.iota {dimensions = array<i32: 1>} : vector<8x128xi32>
    %245 = tpu.iota {dimensions = array<i32: 0>} : vector<8x128xi32>
    %c0_i32 = arith.constant 0 : i32
    %246 = vector.broadcast %c0_i32 : i32 to vector<8x128xi32>
    %247 = arith.cmpi eq, %244, %246 : vector<8x128xi32>
    %cst_141 = arith.constant 0.000000e+00 : f32
    %248 = vector.shape_cast %226 : vector<1x1xf32> to vector<1x1xf32>
    %249 = vector.broadcast %248 : vector<1x1xf32> to vector<8x128xf32>
    %250 = vector.broadcast %cst_141 : f32 to vector<8x128xf32>
    %251 = arith.select %247, %249, %250 : vector<8x128xi1>, vector<8x128xf32>
    %c1_i32 = arith.constant 1 : i32
    %252 = vector.broadcast %c1_i32 : i32 to vector<8x128xi32>
    %253 = arith.cmpi eq, %244, %252 : vector<8x128xi32>
    %cst_142 = arith.constant 0.000000e+00 : f32
    %254 = vector.shape_cast %228 : vector<1x1xf32> to vector<1x1xf32>
    %255 = vector.broadcast %254 : vector<1x1xf32> to vector<8x128xf32>
    %256 = vector.broadcast %cst_142 : f32 to vector<8x128xf32>
    %257 = arith.select %253, %255, %256 : vector<8x128xi1>, vector<8x128xf32>
    %258 = arith.addf %251, %257 : vector<8x128xf32>
    %c2_i32 = arith.constant 2 : i32
    %259 = vector.broadcast %c2_i32 : i32 to vector<8x128xi32>
    %260 = arith.cmpi eq, %244, %259 : vector<8x128xi32>
    %cst_143 = arith.constant 0.000000e+00 : f32
    %261 = vector.shape_cast %233 : vector<1x1xf32> to vector<1x1xf32>
    %262 = vector.broadcast %261 : vector<1x1xf32> to vector<8x128xf32>
    %263 = vector.broadcast %cst_143 : f32 to vector<8x128xf32>
    %264 = arith.select %260, %262, %263 : vector<8x128xi1>, vector<8x128xf32>
    %265 = arith.addf %258, %264 : vector<8x128xf32>
    %c3_i32 = arith.constant 3 : i32
    %266 = vector.broadcast %c3_i32 : i32 to vector<8x128xi32>
    %267 = arith.cmpi eq, %244, %266 : vector<8x128xi32>
    %cst_144 = arith.constant 0.000000e+00 : f32
    %268 = vector.shape_cast %241 : vector<1x1xf32> to vector<1x1xf32>
    %269 = vector.broadcast %268 : vector<1x1xf32> to vector<8x128xf32>
    %270 = vector.broadcast %cst_144 : f32 to vector<8x128xf32>
    %271 = arith.select %267, %269, %270 : vector<8x128xi1>, vector<8x128xf32>
    %272 = arith.addf %265, %271 : vector<8x128xf32>
    %c0_i32_145 = arith.constant 0 : i32
    %273 = vector.broadcast %c0_i32_145 : i32 to vector<8x128xi32>
    %274 = arith.cmpi eq, %245, %273 : vector<8x128xi32>
    %cst_146 = arith.constant 0.000000e+00 : f32
    %275 = vector.broadcast %cst_146 : f32 to vector<8x128xf32>
    %276 = arith.select %274, %272, %275 : vector<8x128xi1>, vector<8x128xf32>
    %c0_147 = arith.constant 0 : index
    %c0_148 = arith.constant 0 : index
    %277 = vector.load %arg25[%c0_147, %c0_148] : memref<8x128xf32, #tpu.memory_space<vmem>>, vector<8x128xf32>
    tpu.vector_store %arg25[%c0_147, %c0_148], %276 {strides = array<i32>} : memref<8x128xf32, #tpu.memory_space<vmem>>, vector<8x128xf32>,
    return
  }
  func.func @transform_0(%arg0: i32) -> (i32, i32) {
    %c0_i32 = arith.constant 0 : i32
    %c0_i32_0 = arith.constant 0 : i32
    return %arg0, %c0_i32 : i32, i32
  }
  func.func @transform_1(%arg0: i32) -> (i32, i32) {
    %c0_i32 = arith.constant 0 : i32
    %c0_i32_0 = arith.constant 0 : i32
    return %arg0, %c0_i32 : i32, i32
  }
  func.func @transform_2(%arg0: i32) -> (i32, i32) {
    %c0_i32 = arith.constant 0 : i32
    %c0_i32_0 = arith.constant 0 : i32
    return %arg0, %c0_i32 : i32, i32
  }
  func.func @transform_3(%arg0: i32) -> (i32, i32) {
    %c0_i32 = arith.constant 0 : i32
    %c0_i32_0 = arith.constant 0 : i32
    return %arg0, %c0_i32 : i32, i32
  }
  func.func @transform_4(%arg0: i32) -> (i32, i32) {
    %c0_i32 = arith.constant 0 : i32
    %c0_i32_0 = arith.constant 0 : i32
    return %arg0, %c0_i32 : i32, i32
  }
  func.func @transform_5(%arg0: i32) -> (i32, i32, i32) {
    %c0_i32 = arith.constant 0 : i32
    %c0_i32_0 = arith.constant 0 : i32
    %c0_i32_1 = arith.constant 0 : i32
    return %c0_i32, %arg0, %c0_i32_0 : i32, i32, i32
  }
  func.func @transform_6(%arg0: i32) -> (i32, i32, i32) {
    %c0_i32 = arith.constant 0 : i32
    %c0_i32_0 = arith.constant 0 : i32
    %c0_i32_1 = arith.constant 0 : i32
    return %c0_i32, %arg0, %c0_i32_0 : i32, i32, i32
  }
  func.func @transform_7(%arg0: i32) -> (i32, i32) {
    %c0_i32 = arith.constant 0 : i32
    %c0_i32_0 = arith.constant 0 : i32
    return %arg0, %c0_i32 : i32, i32
  }
  func.func @transform_8(%arg0: i32) -> (i32, i32) {
    %c0_i32 = arith.constant 0 : i32
    %c0_i32_0 = arith.constant 0 : i32
    return %arg0, %c0_i32 : i32, i32
  }
  func.func @transform_9(%arg0: i32) -> (i32, i32) {
    %c0_i32 = arith.constant 0 : i32
    %c0_i32_0 = arith.constant 0 : i32
    return %arg0, %c0_i32 : i32, i32
  }
  func.func @transform_10(%arg0: i32) -> (i32, i32) {
    %c0_i32 = arith.constant 0 : i32
    %c0_i32_0 = arith.constant 0 : i32
    %c0_i32_1 = arith.constant 0 : i32
    return %c0_i32, %c0_i32_0 : i32, i32
  }
  func.func @transform_11(%arg0: i32) -> (i32, i32) {
    %c0_i32 = arith.constant 0 : i32
    %c0_i32_0 = arith.constant 0 : i32
    %c0_i32_1 = arith.constant 0 : i32
    return %c0_i32, %c0_i32_0 : i32, i32
  }
  func.func @transform_12(%arg0: i32) -> (i32, i32) {
    %c0_i32 = arith.constant 0 : i32
    %c0_i32_0 = arith.constant 0 : i32
    %c0_i32_1 = arith.constant 0 : i32
    return %c0_i32, %c0_i32_0 : i32, i32
  }
  func.func @transform_13(%arg0: i32) -> (i32, i32) {
    %c0_i32 = arith.constant 0 : i32
    %c0_i32_0 = arith.constant 0 : i32
    %c0_i32_1 = arith.constant 0 : i32
    return %c0_i32, %c0_i32_0 : i32, i32
  }
  func.func @transform_14(%arg0: i32) -> (i32, i32) {
    %c0_i32 = arith.constant 0 : i32
    %c0_i32_0 = arith.constant 0 : i32
    %c0_i32_1 = arith.constant 0 : i32
    return %c0_i32, %c0_i32_0 : i32, i32
  }
  func.func @transform_15(%arg0: i32) -> (i32, i32) {
    %c0_i32 = arith.constant 0 : i32
    %c0_i32_0 = arith.constant 0 : i32
    %c0_i32_1 = arith.constant 0 : i32
    return %c0_i32, %c0_i32_0 : i32, i32
  }
  func.func @transform_16(%arg0: i32) -> (i32, i32) {
    %c0_i32 = arith.constant 0 : i32
    %c0_i32_0 = arith.constant 0 : i32
    %c0_i32_1 = arith.constant 0 : i32
    return %c0_i32, %c0_i32_0 : i32, i32
  }
  func.func @transform_17(%arg0: i32) -> (i32, i32) {
    %c0_i32 = arith.constant 0 : i32
    %c0_i32_0 = arith.constant 0 : i32
    %c0_i32_1 = arith.constant 0 : i32
    return %c0_i32, %c0_i32_0 : i32, i32
  }
  func.func @transform_18(%arg0: i32) -> (i32, i32) {
    %c0_i32 = arith.constant 0 : i32
    %c0_i32_0 = arith.constant 0 : i32
    %c0_i32_1 = arith.constant 0 : i32
    return %c0_i32, %c0_i32_0 : i32, i32
  }
  func.func @transform_19(%arg0: i32) -> (i32, i32) {
    %c0_i32 = arith.constant 0 : i32
    %c0_i32_0 = arith.constant 0 : i32
    %c0_i32_1 = arith.constant 0 : i32
    return %c0_i32, %c0_i32_0 : i32, i32
  }
  func.func @transform_20(%arg0: i32) -> (i32, i32) {
    %c0_i32 = arith.constant 0 : i32
    %c0_i32_0 = arith.constant 0 : i32
    %c0_i32_1 = arith.constant 0 : i32
    return %c0_i32, %c0_i32_0 : i32, i32
  }
  func.func @transform_21(%arg0: i32) -> (i32, i32) {
    %c0_i32 = arith.constant 0 : i32
    %c0_i32_0 = arith.constant 0 : i32
    %c0_i32_1 = arith.constant 0 : i32
    return %c0_i32, %c0_i32_0 : i32, i32
  }
  func.func @transform_22(%arg0: i32) -> (i32, i32) {
    %c0_i32 = arith.constant 0 : i32
    %c0_i32_0 = arith.constant 0 : i32
    return %arg0, %c0_i32 : i32, i32
  }
  func.func @transform_23(%arg0: i32) -> (i32, i32) {
    %c0_i32 = arith.constant 0 : i32
    %c0_i32_0 = arith.constant 0 : i32
    return %arg0, %c0_i32 : i32, i32
  }
  func.func @transform_24(%arg0: i32) -> (i32, i32) {
    %c0_i32 = arith.constant 0 : i32
    %c0_i32_0 = arith.constant 0 : i32
    return %arg0, %c0_i32 : i32, i32
  }
}

</mosaic_0001>

<llo_original>
// kernel: vae2_forward.3
$region0: #{vae2_forward.3}
  #allocation0 [shape = 'u32[]', space=smem, size = 0x4, offset = 0x4, fixed_abs, tag = 'smem constant byte address 0x4 - core index']
  #allocation1 [shape = 'u32[72,128]{1,0:T(1,128)}', space=vmem, size = 0x9000, scoped, tag = 'internal scratch']
  %s0 = inlined_call_operand.vmem [shape: f32[8,256], index: 0, kind: input, shape index: {}]
  %s1 = inlined_call_operand.vmem [shape: f32[8,256], index: 1, kind: input, shape index: {}]
  %s2 = inlined_call_operand.vmem [shape: f32[8,256], index: 2, kind: input, shape index: {}]
  %s3 = inlined_call_operand.vmem [shape: f32[8,2], index: 3, kind: input, shape index: {}]
  %s4 = inlined_call_operand.vmem [shape: f32[8,2], index: 4, kind: input, shape index: {}]
  %s5 = inlined_call_operand.vmem [shape: f32[3,8,128], index: 5, kind: input, shape index: {}]
  %s6 = inlined_call_operand.vmem [shape: f32[3,8,128], index: 6, kind: input, shape index: {}]
  %s7 = inlined_call_operand.vmem [shape: f32[8,128], index: 7, kind: input, shape index: {}]
  %s8 = inlined_call_operand.vmem [shape: f32[8,128], index: 8, kind: input, shape index: {}]
  %s9 = inlined_call_operand.vmem [shape: f32[8,128], index: 9, kind: input, shape index: {}]
  %s10 = inlined_call_operand.vmem [shape: bf16[256,128], index: 10, kind: input, shape index: {}]
  %s11 = inlined_call_operand.vmem [shape: f32[1,128], index: 11, kind: input, shape index: {}]
  %s12 = inlined_call_operand.vmem [shape: bf16[128,128], index: 12, kind: input, shape index: {}]
  %s13 = inlined_call_operand.vmem [shape: f32[1,128], index: 13, kind: input, shape index: {}]
  %s14 = inlined_call_operand.vmem [shape: bf16[128,256], index: 14, kind: input, shape index: {}]
  %s15 = inlined_call_operand.vmem [shape: f32[1,256], index: 15, kind: input, shape index: {}]
  %s16 = inlined_call_operand.vmem [shape: bf16[128,128], index: 16, kind: input, shape index: {}]
  %s17 = inlined_call_operand.vmem [shape: f32[1,128], index: 17, kind: input, shape index: {}]
  %s18 = inlined_call_operand.vmem [shape: bf16[128,128], index: 18, kind: input, shape index: {}]
  %s19 = inlined_call_operand.vmem [shape: f32[1,128], index: 19, kind: input, shape index: {}]
  %s20 = inlined_call_operand.vmem [shape: bf16[128,256], index: 20, kind: input, shape index: {}]
  %s21 = inlined_call_operand.vmem [shape: f32[1,256], index: 21, kind: input, shape index: {}]
  %s22 = inlined_call_operand.hbm [shape: f32[8,256], index: 22, kind: output, shape index: {0}]
  %s23 = inlined_call_operand.hbm [shape: f32[8,128], index: 23, kind: output, shape index: {1}]
  %s24 = inlined_call_operand.vmem [shape: f32[8,128], index: 24, kind: output, shape index: {2}]
  %25 = xla_tuple %s22, %s23, %s24
  %s26 = sld [smem:[#allocation0]]
  $region114: #{vae2_forward.3} parent=0
    _
  %s28 = ssub.s32 1, %s26
  %s29 = scalar_select 0, %s28, %s26
  $region1: #{vae2_forward.3} parent=0
    #allocation2 [shape = 'u8[8192]{0}', space=vmem, size = 0x2000, scoped, tag = 'output window, operand 0, single buffered']
    #allocation3 [shape = 's32[1]{0}', space=sflag, size = 0x4, scoped, tag = 'scoped memory for vae2_forward.3']
    #allocation4 [shape = 'u8[4096]{0}', space=vmem, size = 0x1000, scoped, tag = 'output window, operand 1, single buffered']
    #allocation5 [shape = 's32[1]{0}', space=sflag, size = 0x4, scoped, tag = 'scoped memory for vae2_forward.3']
    %30 = vsyncpa [#allocation3], 0
    %31 = vsyncpa [#allocation5], 0
    // Predicated region
    $region2: #{vae2_forward.3} parent=1 // pred_check
      _
    $region3: #{vae2_forward.3} parent=1 // pred_check_branch
      %33 = sbr.rel (0) target = $region5
    $region4: #{vae2_forward.3} parent=1 // pred_region
      _
    $region5: #{vae2_forward.3} parent=1 // pred_fallthru
      _
    // Predicated region
    $region6: #{vae2_forward.3} parent=1 // pred_check
      _
    $region7: #{vae2_forward.3} parent=1 // pred_check_branch
      %35 = sbr.rel (0) target = $region9
    $region8: #{vae2_forward.3} parent=1 // pred_region
      _
    $region9: #{vae2_forward.3} parent=1 // pred_fallthru
      _
    // Predicated region
    $region10: #{vae2_forward.3} parent=1 // pred_check
      _
    $region11: #{vae2_forward.3} parent=1 // pred_check_branch
      %37 = sbr.rel (0) target = $region13
    $region12: #{vae2_forward.3} parent=1 // pred_region
      _
    $region13: #{vae2_forward.3} parent=1 // pred_fallthru
      _
    // Predicated region
    $region14: #{vae2_forward.3} parent=1 // pred_check
      _
    $region15: #{vae2_forward.3} parent=1 // pred_check_branch
      %39 = sbr.rel (0) target = $region17
    $region16: #{vae2_forward.3} parent=1 // pred_region
      _
    $region17: #{vae2_forward.3} parent=1 // pred_fallthru
      _
    // Predicated region
    $region18: #{vae2_forward.3} parent=1 // pred_check
      _
    $region19: #{vae2_forward.3} parent=1 // pred_check_branch
      %41 = sbr.rel (0) target = $region21
    $region20: #{vae2_forward.3} parent=1 // pred_region
      _
    $region21: #{vae2_forward.3} parent=1 // pred_fallthru
      _
    // Predicated region
    $region22: #{vae2_forward.3} parent=1 // pred_check
      _
    $region23: #{vae2_forward.3} parent=1 // pred_check_branch
      %43 = sbr.rel (0) target = $region25
    $region24: #{vae2_forward.3} parent=1 // pred_region
      _
    $region25: #{vae2_forward.3} parent=1 // pred_fallthru
      _
    // Predicated region
    $region26: #{vae2_forward.3} parent=1 // pred_check
      _
    $region27: #{vae2_forward.3} parent=1 // pred_check_branch
      %45 = sbr.rel (0) target = $region29
    $region28: #{vae2_forward.3} parent=1 // pred_region
      _
    $region29: #{vae2_forward.3} parent=1 // pred_fallthru
      _
    // Predicated region
    $region30: #{vae2_forward.3} parent=1 // pred_check
      _
    $region31: #{vae2_forward.3} parent=1 // pred_check_branch
      %47 = sbr.rel (0) target = $region33
    $region32: #{vae2_forward.3} parent=1 // pred_region
      _
    $region33: #{vae2_forward.3} parent=1 // pred_fallthru
      _
    // Predicated region
    $region34: #{vae2_forward.3} parent=1 // pred_check
      _
    $region35: #{vae2_forward.3} parent=1 // pred_check_branch
      %49 = sbr.rel (0) target = $region37
    $region36: #{vae2_forward.3} parent=1 // pred_region
      _
    $region37: #{vae2_forward.3} parent=1 // pred_fallthru
      _
    // Predicated region
    $region38: #{vae2_forward.3} parent=1 // pred_check
      _
    $region39: #{vae2_forward.3} parent=1 // pred_check_branch
      %51 = sbr.rel (0) target = $region41
    $region40: #{vae2_forward.3} parent=1 // pred_region
      _
    $region41: #{vae2_forward.3} parent=1 // pred_fallthru
      _
    // Predicated region
    $region42: #{vae2_forward.3} parent=1 // pred_check
      _
    $region43: #{vae2_forward.3} parent=1 // pred_check_branch
      %53 = sbr.rel (0) target = $region45
    $region44: #{vae2_forward.3} parent=1 // pred_region
      _
    $region45: #{vae2_forward.3} parent=1 // pred_fallthru
      _
    // Predicated region
    $region46: #{vae2_forward.3} parent=1 // pred_check
      _
    $region47: #{vae2_forward.3} parent=1 // pred_check_branch
      %55 = sbr.rel (0) target = $region49
    $region48: #{vae2_forward.3} parent=1 // pred_region
      _
    $region49: #{vae2_forward.3} parent=1 // pred_fallthru
      _
    // Predicated region
    $region50: #{vae2_forward.3} parent=1 // pred_check
      _
    $region51: #{vae2_forward.3} parent=1 // pred_check_branch
      %57 = sbr.rel (0) target = $region53
    $region52: #{vae2_forward.3} parent=1 // pred_region
      _
    $region53: #{vae2_forward.3} parent=1 // pred_fallthru
      _
    // Predicated region
    $region54: #{vae2_forward.3} parent=1 // pred_check
      _
    $region55: #{vae2_forward.3} parent=1 // pred_check_branch
      %59 = sbr.rel (0) target = $region57
    $region56: #{vae2_forward.3} parent=1 // pred_region
      _
    $region57: #{vae2_forward.3} parent=1 // pred_fallthru
      _
    // Predicated region
    $region58: #{vae2_forward.3} parent=1 // pred_check
      _
    $region59: #{vae2_forward.3} parent=1 // pred_check_branch
      %61 = sbr.rel (0) target = $region61
    $region60: #{vae2_forward.3} parent=1 // pred_region
      _
    $region61: #{vae2_forward.3} parent=1 // pred_fallthru
      _
    // Predicated region
    $region62: #{vae2_forward.3} parent=1 // pred_check
      _
    $region63: #{vae2_forward.3} parent=1 // pred_check_branch
      %63 = sbr.rel (0) target = $region65
    $region64: #{vae2_forward.3} parent=1 // pred_region
      _
    $region65: #{vae2_forward.3} parent=1 // pred_fallthru
      _
    // Predicated region
    $region66: #{vae2_forward.3} parent=1 // pred_check
      _
    $region67: #{vae2_forward.3} parent=1 // pred_check_branch
      %65 = sbr.rel (0) target = $region69
    $region68: #{vae2_forward.3} parent=1 // pred_region
      _
    $region69: #{vae2_forward.3} parent=1 // pred_fallthru
      _
    // Predicated region
    $region70: #{vae2_forward.3} parent=1 // pred_check
      _
    $region71: #{vae2_forward.3} parent=1 // pred_check_branch
      %67 = sbr.rel (0) target = $region73
    $region72: #{vae2_forward.3} parent=1 // pred_region
      _
    $region73: #{vae2_forward.3} parent=1 // pred_fallthru
      _
    // Predicated region
    $region74: #{vae2_forward.3} parent=1 // pred_check
      _
    $region75: #{vae2_forward.3} parent=1 // pred_check_branch
      %69 = sbr.rel (0) target = $region77
    $region76: #{vae2_forward.3} parent=1 // pred_region
      _
    $region77: #{vae2_forward.3} parent=1 // pred_fallthru
      _
    // Predicated region
    $region78: #{vae2_forward.3} parent=1 // pred_check
      _
    $region79: #{vae2_forward.3} parent=1 // pred_check_branch
      %71 = sbr.rel (0) target = $region81
    $region80: #{vae2_forward.3} parent=1 // pred_region
      _
    $region81: #{vae2_forward.3} parent=1 // pred_fallthru
      _
    // Predicated region
    $region82: #{vae2_forward.3} parent=1 // pred_check
      _
    $region83: #{vae2_forward.3} parent=1 // pred_check_branch
      %73 = sbr.rel (0) target = $region85
    $region84: #{vae2_forward.3} parent=1 // pred_region
      _
    $region85: #{vae2_forward.3} parent=1 // pred_fallthru
      _
    // Predicated region
    $region86: #{vae2_forward.3} parent=1 // pred_check
      _
    $region87: #{vae2_forward.3} parent=1 // pred_check_branch
      %75 = sbr.rel (0) target = $region89
    $region88: #{vae2_forward.3} parent=1 // pred_region
      _
    $region89: #{vae2_forward.3} parent=1 // pred_fallthru
      _
    %v76 = vld [vmem:[%s0] sm:$0xff]
    %v77 = vld [vmem:[%s0 + $0x8] sm:$0xff]
    %v78 = vld [vmem:[%s5] sm:$0xff]
    %v79 = vld [vmem:[%s6] sm:$0xff]
    %v80 = vpack.c.bf16 %v76, %v76
    %v81 = vpack.c.bf16 %v77, %v77
    %v82 = vld [vmem:[%s10] sm:$0xf]
    %v83 = vld [vmem:[%s10 + $0x4] sm:$0xf]
    %v84 = vld [vmem:[%s10 + $0x8] sm:$0xf]
    %v85 = vld [vmem:[%s10 + $0xc] sm:$0xf]
    %v86 = vld [vmem:[%s10 + $0x10] sm:$0xf]
    %v87 = vld [vmem:[%s10 + $0x14] sm:$0xf]
    %v88 = vld [vmem:[%s10 + $0x18] sm:$0xf]
    %v89 = vld [vmem:[%s10 + $0x1c] sm:$0xf]
    %v90 = vld [vmem:[%s10 + $0x20] sm:$0xf]
    %v91 = vld [vmem:[%s10 + $0x24] sm:$0xf]
    %v92 = vld [vmem:[%s10 + $0x28] sm:$0xf]
    %v93 = vld [vmem:[%s10 + $0x2c] sm:$0xf]
    %v94 = vld [vmem:[%s10 + $0x30] sm:$0xf]
    %v95 = vld [vmem:[%s10 + $0x34] sm:$0xf]
    %v96 = vld [vmem:[%s10 + $0x38] sm:$0xf]
    %v97 = vld [vmem:[%s10 + $0x3c] sm:$0xf]
    %v98 = vld [vmem:[%s10 + $0x40] sm:$0xf]
    %v99 = vld [vmem:[%s10 + $0x44] sm:$0xf]
    %v100 = vld [vmem:[%s10 + $0x48] sm:$0xf]
    %v101 = vld [vmem:[%s10 + $0x4c] sm:$0xf]
    %v102 = vld [vmem:[%s10 + $0x50] sm:$0xf]
    %v103 = vld [vmem:[%s10 + $0x54] sm:$0xf]
    %v104 = vld [vmem:[%s10 + $0x58] sm:$0xf]
    %v105 = vld [vmem:[%s10 + $0x5c] sm:$0xf]
    %v106 = vld [vmem:[%s10 + $0x60] sm:$0xf]
    %v107 = vld [vmem:[%s10 + $0x64] sm:$0xf]
    %v108 = vld [vmem:[%s10 + $0x68] sm:$0xf]
    %v109 = vld [vmem:[%s10 + $0x6c] sm:$0xf]
    %v110 = vld [vmem:[%s10 + $0x70] sm:$0xf]
    %v111 = vld [vmem:[%s10 + $0x74] sm:$0xf]
    %v112 = vld [vmem:[%s10 + $0x78] sm:$0xf]
    %v113 = vld [vmem:[%s10 + $0x7c] sm:$0xf]
    %v114 = vld [vmem:[%s11] sm:$0x1]
    %v116 = vperm.slane %v114, 0
    %v150 = vunpack.c.l.b16 %v82
    %v151 = vunpack.c.l.b16 %v83
    %v152 = vunpack.c.l.b16 %v84
    %v153 = vunpack.c.l.b16 %v85
    %v154 = vunpack.c.l.b16 %v86
    %v155 = vunpack.c.l.b16 %v87
    %v156 = vunpack.c.l.b16 %v88
    %v157 = vunpack.c.l.b16 %v89
    %v158 = vunpack.c.l.b16 %v90
    %v159 = vunpack.c.l.b16 %v91
    %v160 = vunpack.c.l.b16 %v92
    %v161 = vunpack.c.l.b16 %v93
    %v162 = vunpack.c.l.b16 %v94
    %v163 = vunpack.c.l.b16 %v95
    %v164 = vunpack.c.l.b16 %v96
    %v165 = vunpack.c.l.b16 %v97
    %v166 = vunpack.c.l.b16 %v98
    %v167 = vunpack.c.l.b16 %v99
    %v168 = vunpack.c.l.b16 %v100
    %v169 = vunpack.c.l.b16 %v101
    %v170 = vunpack.c.l.b16 %v102
    %v171 = vunpack.c.l.b16 %v103
    %v172 = vunpack.c.l.b16 %v104
    %v173 = vunpack.c.l.b16 %v105
    %v174 = vunpack.c.l.b16 %v106
    %v175 = vunpack.c.l.b16 %v107
    %v176 = vunpack.c.l.b16 %v108
    %v177 = vunpack.c.l.b16 %v109
    %v178 = vunpack.c.l.b16 %v110
    %v179 = vunpack.c.l.b16 %v111
    %v180 = vunpack.c.l.b16 %v112
    %v181 = vunpack.c.l.b16 %v113
    %v182 = vpack.c.b16 %v151, %v150
    %v183 = vpack.c.b16 %v153, %v152
    %v184 = vpack.c.b16 %v155, %v154
    %v185 = vpack.c.b16 %v157, %v156
    %v186 = vpack.c.b16 %v159, %v158
    %v187 = vpack.c.b16 %v161, %v160
    %v188 = vpack.c.b16 %v163, %v162
    %v189 = vpack.c.b16 %v165, %v164
    %v190 = vpack.c.b16 %v167, %v166
    %v191 = vpack.c.b16 %v169, %v168
    %v192 = vpack.c.b16 %v171, %v170
    %v193 = vpack.c.b16 %v173, %v172
    %v194 = vpack.c.b16 %v175, %v174
    %v195 = vpack.c.b16 %v177, %v176
    %v196 = vpack.c.b16 %v179, %v178
    %v197 = vpack.c.b16 %v181, %v180
    %214 = vmatpush.bf16.msra.mxu0 %v189
    %215 = vmatpush.bf16.msra.mxu0 %v188
    %216 = vmatpush.bf16.msra.mxu0 %v187
    %217 = vmatpush.bf16.msra.mxu0 %v186
    %218 = vmatpush.bf16.msra.mxu0 %v185
    %219 = vmatpush.bf16.msra.mxu0 %v184
    %220 = vmatpush.bf16.msra.mxu0 %v183
    %221 = vmatpush.bf16.msra.mxu0 %v182
    %222 = vmatmul.bf16.gmra.mxu0 %v80
    %v223 = vpop.f32.mrf.mxu0
    %v224 = vadd.f32 %v116, %v223
    %v225 = vpop.f32.mrf.mxu0
    %226 = vdwg.mxu0
    %227 = vmatpush.bf16.msra.mxu0 %v197
    %228 = vmatpush.bf16.msra.mxu0 %v196
    %229 = vmatpush.bf16.msra.mxu0 %v195
    %230 = vmatpush.bf16.msra.mxu0 %v194
    %231 = vmatpush.bf16.msra.mxu0 %v193
    %232 = vmatpush.bf16.msra.mxu0 %v192
    %233 = vmatpush.bf16.msra.mxu0 %v191
    %234 = vmatpush.bf16.msra.mxu0 %v190
    %235 = vmatmul.bf16.gmra.mxu0 %v81
    %v236 = vpop.f32.mrf.mxu0
    %v237 = vadd.f32 %v224, %v236
    %v238 = vpop.f32.mrf.mxu0
    %239 = vdwg.mxu0
    %vm240 = vcmp.gt.f32.partialorder %v237, 0.0
    %v241 = vmin.f32 %v237, 0.0
    %v242 = vmul.f32 %v241, 1.442695
    %v243 = vpow.pop %v242
    %v244 = vsub.f32 %v243, 1.0
    %v245 = vsel %vm240, %v237, %v244
    %v246 = vmul.f32 %v245, %v78
    %v247 = vpack.c.bf16 %v246, %v246
    %v248 = vld [vmem:[%s12] sm:$0xf]
    %v249 = vld [vmem:[%s12 + $0x4] sm:$0xf]
    %v250 = vld [vmem:[%s12 + $0x8] sm:$0xf]
    %v251 = vld [vmem:[%s12 + $0xc] sm:$0xf]
    %v252 = vld [vmem:[%s12 + $0x10] sm:$0xf]
    %v253 = vld [vmem:[%s12 + $0x14] sm:$0xf]
    %v254 = vld [vmem:[%s12 + $0x18] sm:$0xf]
    %v255 = vld [vmem:[%s12 + $0x1c] sm:$0xf]
    %v256 = vld [vmem:[%s12 + $0x20] sm:$0xf]
    %v257 = vld [vmem:[%s12 + $0x24] sm:$0xf]
    %v258 = vld [vmem:[%s12 + $0x28] sm:$0xf]
    %v259 = vld [vmem:[%s12 + $0x2c] sm:$0xf]
    %v260 = vld [vmem:[%s12 + $0x30] sm:$0xf]
    %v261 = vld [vmem:[%s12 + $0x34] sm:$0xf]
    %v262 = vld [vmem:[%s12 + $0x38] sm:$0xf]
    %v263 = vld [vmem:[%s12 + $0x3c] sm:$0xf]
    %v264 = vld [vmem:[%s13] sm:$0x1]
    %v266 = vperm.slane %v264, 0
    %v284 = vunpack.c.l.b16 %v248
    %v285 = vunpack.c.l.b16 %v249
    %v286 = vunpack.c.l.b16 %v250
    %v287 = vunpack.c.l.b16 %v251
    %v288 = vunpack.c.l.b16 %v252
    %v289 = vunpack.c.l.b16 %v253
    %v290 = vunpack.c.l.b16 %v254
    %v291 = vunpack.c.l.b16 %v255
    %v292 = vunpack.c.l.b16 %v256
    %v293 = vunpack.c.l.b16 %v257
    %v294 = vunpack.c.l.b16 %v258
    %v295 = vunpack.c.l.b16 %v259
    %v296 = vunpack.c.l.b16 %v260
    %v297 = vunpack.c.l.b16 %v261
    %v298 = vunpack.c.l.b16 %v262
    %v299 = vunpack.c.l.b16 %v263
    %v300 = vpack.c.b16 %v285, %v284
    %v301 = vpack.c.b16 %v287, %v286
    %v302 = vpack.c.b16 %v289, %v288
    %v303 = vpack.c.b16 %v291, %v290
    %v304 = vpack.c.b16 %v293, %v292
    %v305 = vpack.c.b16 %v295, %v294
    %v306 = vpack.c.b16 %v297, %v296
    %v307 = vpack.c.b16 %v299, %v298
    %316 = vmatpush.bf16.msra.mxu0 %v307
    %317 = vmatpush.bf16.msra.mxu0 %v306
    %318 = vmatpush.bf16.msra.mxu0 %v305
    %319 = vmatpush.bf16.msra.mxu0 %v304
    %320 = vmatpush.bf16.msra.mxu0 %v303
    %321 = vmatpush.bf16.msra.mxu0 %v302
    %322 = vmatpush.bf16.msra.mxu0 %v301
    %323 = vmatpush.bf16.msra.mxu0 %v300
    %324 = vmatmul.bf16.gmra.mxu0 %v247
    %v325 = vpop.f32.mrf.mxu0
    %v326 = vadd.f32 %v266, %v325
    %v327 = vpop.f32.mrf.mxu0
    %328 = vdwg.mxu0
    %v329 = vtanh.pop %v326
    %v330 = vmul.f32 %v329, %v79
    %v331 = vpack.c.bf16 %v330, %v330
    %v332 = vld [vmem:[%s14] sm:$0xff]
    %v333 = vld [vmem:[%s14 + $0x8] sm:$0xff]
    %v334 = vld [vmem:[%s14 + $0x10] sm:$0xff]
    %v335 = vld [vmem:[%s14 + $0x18] sm:$0xff]
    %v336 = vld [vmem:[%s14 + $0x20] sm:$0xff]
    %v337 = vld [vmem:[%s14 + $0x28] sm:$0xff]
    %v338 = vld [vmem:[%s14 + $0x30] sm:$0xff]
    %v339 = vld [vmem:[%s14 + $0x38] sm:$0xff]
    %v340 = vld [vmem:[%s14 + $0x40] sm:$0xff]
    %v341 = vld [vmem:[%s14 + $0x48] sm:$0xff]
    %v342 = vld [vmem:[%s14 + $0x50] sm:$0xff]
    %v343 = vld [vmem:[%s14 + $0x58] sm:$0xff]
    %v344 = vld [vmem:[%s14 + $0x60] sm:$0xff]
    %v345 = vld [vmem:[%s14 + $0x68] sm:$0xff]
    %v346 = vld [vmem:[%s14 + $0x70] sm:$0xff]
    %v347 = vld [vmem:[%s14 + $0x78] sm:$0xff]
    %v348 = vld [vmem:[%s15] sm:$0x3]
    %v350 = vperm.slane %v348, 0
    %v351 = vperm.slane %v348, 1
    %v370 = vunpack.c.l.b16 %v332
    %v371 = vunpack.c.h.b16 %v332
    %v372 = vunpack.c.l.b16 %v333
    %v373 = vunpack.c.h.b16 %v333
    %v374 = vunpack.c.l.b16 %v334
    %v375 = vunpack.c.h.b16 %v334
    %v376 = vunpack.c.l.b16 %v335
    %v377 = vunpack.c.h.b16 %v335
    %v378 = vunpack.c.l.b16 %v336
    %v379 = vunpack.c.h.b16 %v336
    %v380 = vunpack.c.l.b16 %v337
    %v381 = vunpack.c.h.b16 %v337
    %v382 = vunpack.c.l.b16 %v338
    %v383 = vunpack.c.h.b16 %v338
    %v384 = vunpack.c.l.b16 %v339
    %v385 = vunpack.c.h.b16 %v339
    %v386 = vunpack.c.l.b16 %v340
    %v387 = vunpack.c.h.b16 %v340
    %v388 = vunpack.c.l.b16 %v341
    %v389 = vunpack.c.h.b16 %v341
    %v390 = vunpack.c.l.b16 %v342
    %v391 = vunpack.c.h.b16 %v342
    %v392 = vunpack.c.l.b16 %v343
    %v393 = vunpack.c.h.b16 %v343
    %v394 = vunpack.c.l.b16 %v344
    %v395 = vunpack.c.h.b16 %v344
    %v396 = vunpack.c.l.b16 %v345
    %v397 = vunpack.c.h.b16 %v345
    %v398 = vunpack.c.l.b16 %v346
    %v399 = vunpack.c.h.b16 %v346
    %v400 = vunpack.c.l.b16 %v347
    %v401 = vunpack.c.h.b16 %v347
    %v402 = vpack.c.b16 %v372, %v370
    %v403 = vpack.c.b16 %v373, %v371
    %v404 = vpack.c.b16 %v376, %v374
    %v405 = vpack.c.b16 %v377, %v375
    %v406 = vpack.c.b16 %v380, %v378
    %v407 = vpack.c.b16 %v381, %v379
    %v408 = vpack.c.b16 %v384, %v382
    %v409 = vpack.c.b16 %v385, %v383
    %v410 = vpack.c.b16 %v388, %v386
    %v411 = vpack.c.b16 %v389, %v387
    %v412 = vpack.c.b16 %v392, %v390
    %v413 = vpack.c.b16 %v393, %v391
    %v414 = vpack.c.b16 %v396, %v394
    %v415 = vpack.c.b16 %v397, %v395
    %v416 = vpack.c.b16 %v400, %v398
    %v417 = vpack.c.b16 %v401, %v399
    %434 = vmatpush.bf16.msra.mxu0 %v416
    %435 = vmatpush.bf16.msra.mxu0 %v414
    %436 = vmatpush.bf16.msra.mxu0 %v412
    %437 = vmatpush.bf16.msra.mxu0 %v410
    %438 = vmatpush.bf16.msra.mxu0 %v408
    %439 = vmatpush.bf16.msra.mxu0 %v406
    %440 = vmatpush.bf16.msra.mxu0 %v404
    %441 = vmatpush.bf16.msra.mxu0 %v402
    %442 = vmatmul.bf16.gmra.mxu0 %v331
    %v443 = vpop.f32.mrf.mxu0
    %v444 = vadd.f32 %v350, %v443
    %v445 = vpop.f32.mrf.mxu0
    %446 = vdwg.mxu0
    %447 = vmatpush.bf16.msra.mxu0 %v417
    %448 = vmatpush.bf16.msra.mxu0 %v415
    %449 = vmatpush.bf16.msra.mxu0 %v413
    %450 = vmatpush.bf16.msra.mxu0 %v411
    %451 = vmatpush.bf16.msra.mxu0 %v409
    %452 = vmatpush.bf16.msra.mxu0 %v407
    %453 = vmatpush.bf16.msra.mxu0 %v405
    %454 = vmatpush.bf16.msra.mxu0 %v403
    %455 = vmatmul.bf16.gmra.mxu0 %v331
    %v456 = vpop.f32.mrf.mxu0
    %v457 = vadd.f32 %v351, %v456
    %v458 = vpop.f32.mrf.mxu0
    %459 = vdwg.mxu0
    %vm460 = vcmp.gt.f32.partialorder %v457, 20.0
    %v461 = vmin.f32 %v457, 20.0
    %v462 = vmul.f32 %v461, 1.442695
    %v463 = vpow.pop %v462
    %v464 = vadd.f32 %v463, 1.0
    %v465 = vlog2.pop %v464
    %v466 = vmul.f32 %v465, 0.6931472
    %v467 = vsel %vm460, %v457, %v466
    %v468 = vadd.f32 %v467, 1e-06
    %v469 = vld [vmem:[%s1] sm:$0xff]
    %v470 = vld [vmem:[%s1 + $0x8] sm:$0xff]
    %s471 = scalar_lea.vmem %s5, 8
    %v472 = vld [vmem:[%s471] sm:$0xff]
    %s473 = scalar_lea.vmem %s6, 8
    %v474 = vld [vmem:[%s473] sm:$0xff]
    %v475 = vpack.c.bf16 %v469, %v469
    %v476 = vpack.c.bf16 %v470, %v470
    %477 = vmatpush.bf16.msra.mxu0 %v189
    %478 = vmatpush.bf16.msra.mxu0 %v188
    %479 = vmatpush.bf16.msra.mxu0 %v187
    %480 = vmatpush.bf16.msra.mxu0 %v186
    %481 = vmatpush.bf16.msra.mxu0 %v185
    %482 = vmatpush.bf16.msra.mxu0 %v184
    %483 = vmatpush.bf16.msra.mxu0 %v183
    %484 = vmatpush.bf16.msra.mxu0 %v182
    %485 = vmatmul.bf16.gmra.mxu0 %v475
    %v486 = vpop.f32.mrf.mxu0
    %v487 = vadd.f32 %v116, %v486
    %v488 = vpop.f32.mrf.mxu0
    %489 = vdwg.mxu0
    %490 = vmatpush.bf16.msra.mxu0 %v197
    %491 = vmatpush.bf16.msra.mxu0 %v196
    %492 = vmatpush.bf16.msra.mxu0 %v195
    %493 = vmatpush.bf16.msra.mxu0 %v194
    %494 = vmatpush.bf16.msra.mxu0 %v193
    %495 = vmatpush.bf16.msra.mxu0 %v192
    %496 = vmatpush.bf16.msra.mxu0 %v191
    %497 = vmatpush.bf16.msra.mxu0 %v190
    %498 = vmatmul.bf16.gmra.mxu0 %v476
    %v499 = vpop.f32.mrf.mxu0
    %v500 = vadd.f32 %v487, %v499
    %v501 = vpop.f32.mrf.mxu0
    %502 = vdwg.mxu0
    %vm503 = vcmp.gt.f32.partialorder %v500, 0.0
    %v504 = vmin.f32 %v500, 0.0
    %v505 = vmul.f32 %v504, 1.442695
    %v506 = vpow.pop %v505
    %v507 = vsub.f32 %v506, 1.0
    %v508 = vsel %vm503, %v500, %v507
    %v509 = vmul.f32 %v508, %v472
    %v510 = vpack.c.bf16 %v509, %v509
    %511 = vmatpush.bf16.msra.mxu0 %v307
    %512 = vmatpush.bf16.msra.mxu0 %v306
    %513 = vmatpush.bf16.msra.mxu0 %v305
    %514 = vmatpush.bf16.msra.mxu0 %v304
    %515 = vmatpush.bf16.msra.mxu0 %v303
    %516 = vmatpush.bf16.msra.mxu0 %v302
    %517 = vmatpush.bf16.msra.mxu0 %v301
    %518 = vmatpush.bf16.msra.mxu0 %v300
    %519 = vmatmul.bf16.gmra.mxu0 %v510
    %v520 = vpop.f32.mrf.mxu0
    %v521 = vadd.f32 %v266, %v520
    %v522 = vpop.f32.mrf.mxu0
    %523 = vdwg.mxu0
    %v524 = vtanh.pop %v521
    %v525 = vmul.f32 %v524, %v474
    %v526 = vpack.c.bf16 %v525, %v525
    %527 = vmatpush.bf16.msra.mxu0 %v416
    %528 = vmatpush.bf16.msra.mxu0 %v414
    %529 = vmatpush.bf16.msra.mxu0 %v412
    %530 = vmatpush.bf16.msra.mxu0 %v410
    %531 = vmatpush.bf16.msra.mxu0 %v408
    %532 = vmatpush.bf16.msra.mxu0 %v406
    %533 = vmatpush.bf16.msra.mxu0 %v404
    %534 = vmatpush.bf16.msra.mxu0 %v402
    %535 = vmatmul.bf16.gmra.mxu0 %v526
    %v536 = vpop.f32.mrf.mxu0
    %v537 = vadd.f32 %v350, %v536
    %v538 = vpop.f32.mrf.mxu0
    %539 = vdwg.mxu0
    %540 = vmatpush.bf16.msra.mxu0 %v417
    %541 = vmatpush.bf16.msra.mxu0 %v415
    %542 = vmatpush.bf16.msra.mxu0 %v413
    %543 = vmatpush.bf16.msra.mxu0 %v411
    %544 = vmatpush.bf16.msra.mxu0 %v409
    %545 = vmatpush.bf16.msra.mxu0 %v407
    %546 = vmatpush.bf16.msra.mxu0 %v405
    %547 = vmatpush.bf16.msra.mxu0 %v403
    %548 = vmatmul.bf16.gmra.mxu0 %v526
    %v549 = vpop.f32.mrf.mxu0
    %v550 = vadd.f32 %v351, %v549
    %v551 = vpop.f32.mrf.mxu0
    %552 = vdwg.mxu0
    %vm553 = vcmp.gt.f32.partialorder %v550, 20.0
    %v554 = vmin.f32 %v550, 20.0
    %v555 = vmul.f32 %v554, 1.442695
    %v556 = vpow.pop %v555
    %v557 = vadd.f32 %v556, 1.0
    %v558 = vlog2.pop %v557
    %v559 = vmul.f32 %v558, 0.6931472
    %v560 = vsel %vm553, %v550, %v559
    %v561 = vadd.f32 %v560, 1e-06
    %v562 = vld [vmem:[%s2] sm:$0xff]
    %v563 = vld [vmem:[%s2 + $0x8] sm:$0xff]
    %s564 = scalar_lea.vmem %s5, 16
    %v565 = vld [vmem:[%s564] sm:$0xff]
    %s566 = scalar_lea.vmem %s6, 16
    %v567 = vld [vmem:[%s566] sm:$0xff]
    %v568 = vpack.c.bf16 %v562, %v562
    %v569 = vpack.c.bf16 %v563, %v563
    %570 = vmatpush.bf16.msra.mxu0 %v189
    %571 = vmatpush.bf16.msra.mxu0 %v188
    %572 = vmatpush.bf16.msra.mxu0 %v187
    %573 = vmatpush.bf16.msra.mxu0 %v186
    %574 = vmatpush.bf16.msra.mxu0 %v185
    %575 = vmatpush.bf16.msra.mxu0 %v184
    %576 = vmatpush.bf16.msra.mxu0 %v183
    %577 = vmatpush.bf16.msra.mxu0 %v182
    %578 = vmatmul.bf16.gmra.mxu0 %v568
    %v579 = vpop.f32.mrf.mxu0
    %v580 = vadd.f32 %v116, %v579
    %v581 = vpop.f32.mrf.mxu0
    %582 = vdwg.mxu0
    %583 = vmatpush.bf16.msra.mxu0 %v197
    %584 = vmatpush.bf16.msra.mxu0 %v196
    %585 = vmatpush.bf16.msra.mxu0 %v195
    %586 = vmatpush.bf16.msra.mxu0 %v194
    %587 = vmatpush.bf16.msra.mxu0 %v193
    %588 = vmatpush.bf16.msra.mxu0 %v192
    %589 = vmatpush.bf16.msra.mxu0 %v191
    %590 = vmatpush.bf16.msra.mxu0 %v190
    %591 = vmatmul.bf16.gmra.mxu0 %v569
    %v592 = vpop.f32.mrf.mxu0
    %v593 = vadd.f32 %v580, %v592
    %v594 = vpop.f32.mrf.mxu0
    %595 = vdwg.mxu0
    %vm596 = vcmp.gt.f32.partialorder %v593, 0.0
    %v597 = vmin.f32 %v593, 0.0
    %v598 = vmul.f32 %v597, 1.442695
    %v599 = vpow.pop %v598
    %v600 = vsub.f32 %v599, 1.0
    %v601 = vsel %vm596, %v593, %v600
    %v602 = vmul.f32 %v601, %v565
    %v603 = vpack.c.bf16 %v602, %v602
    %604 = vmatpush.bf16.msra.mxu0 %v307
    %605 = vmatpush.bf16.msra.mxu0 %v306
    %606 = vmatpush.bf16.msra.mxu0 %v305
    %607 = vmatpush.bf16.msra.mxu0 %v304
    %608 = vmatpush.bf16.msra.mxu0 %v303
    %609 = vmatpush.bf16.msra.mxu0 %v302
    %610 = vmatpush.bf16.msra.mxu0 %v301
    %611 = vmatpush.bf16.msra.mxu0 %v300
    %612 = vmatmul.bf16.gmra.mxu0 %v603
    %v613 = vpop.f32.mrf.mxu0
    %v614 = vadd.f32 %v266, %v613
    %v615 = vpop.f32.mrf.mxu0
    %616 = vdwg.mxu0
    %v617 = vtanh.pop %v614
    %v618 = vmul.f32 %v617, %v567
    %v619 = vpack.c.bf16 %v618, %v618
    %620 = vmatpush.bf16.msra.mxu0 %v416
    %621 = vmatpush.bf16.msra.mxu0 %v414
    %622 = vmatpush.bf16.msra.mxu0 %v412
    %623 = vmatpush.bf16.msra.mxu0 %v410
    %624 = vmatpush.bf16.msra.mxu0 %v408
    %625 = vmatpush.bf16.msra.mxu0 %v406
    %626 = vmatpush.bf16.msra.mxu0 %v404
    %627 = vmatpush.bf16.msra.mxu0 %v402
    %628 = vmatmul.bf16.gmra.mxu0 %v619
    %v629 = vpop.f32.mrf.mxu0
    %v630 = vadd.f32 %v350, %v629
    %v631 = vpop.f32.mrf.mxu0
    %632 = vdwg.mxu0
    %v633 = vld [vmem:[%s9] sm:$0xff]
    %v634 = vmul.f32 %v561, %v633
    %v635 = vadd.f32 %v537, %v634
    %v636 = vpack.c.bf16 %v635, %v635
    %v637 = vld [vmem:[%s16] sm:$0xf]
    %v638 = vld [vmem:[%s16 + $0x4] sm:$0xf]
    %v639 = vld [vmem:[%s16 + $0x8] sm:$0xf]
    %v640 = vld [vmem:[%s16 + $0xc] sm:$0xf]
    %v641 = vld [vmem:[%s16 + $0x10] sm:$0xf]
    %v642 = vld [vmem:[%s16 + $0x14] sm:$0xf]
    %v643 = vld [vmem:[%s16 + $0x18] sm:$0xf]
    %v644 = vld [vmem:[%s16 + $0x1c] sm:$0xf]
    %v645 = vld [vmem:[%s16 + $0x20] sm:$0xf]
    %v646 = vld [vmem:[%s16 + $0x24] sm:$0xf]
    %v647 = vld [vmem:[%s16 + $0x28] sm:$0xf]
    %v648 = vld [vmem:[%s16 + $0x2c] sm:$0xf]
    %v649 = vld [vmem:[%s16 + $0x30] sm:$0xf]
    %v650 = vld [vmem:[%s16 + $0x34] sm:$0xf]
    %v651 = vld [vmem:[%s16 + $0x38] sm:$0xf]
    %v652 = vld [vmem:[%s16 + $0x3c] sm:$0xf]
    %v653 = vld [vmem:[%s17] sm:$0x1]
    %v655 = vperm.slane %v653, 0
    %v673 = vunpack.c.l.b16 %v637
    %v674 = vunpack.c.l.b16 %v638
    %v675 = vunpack.c.l.b16 %v639
    %v676 = vunpack.c.l.b16 %v640
    %v677 = vunpack.c.l.b16 %v641
    %v678 = vunpack.c.l.b16 %v642
    %v679 = vunpack.c.l.b16 %v643
    %v680 = vunpack.c.l.b16 %v644
    %v681 = vunpack.c.l.b16 %v645
    %v682 = vunpack.c.l.b16 %v646
    %v683 = vunpack.c.l.b16 %v647
    %v684 = vunpack.c.l.b16 %v648
    %v685 = vunpack.c.l.b16 %v649
    %v686 = vunpack.c.l.b16 %v650
    %v687 = vunpack.c.l.b16 %v651
    %v688 = vunpack.c.l.b16 %v652
    %v689 = vpack.c.b16 %v674, %v673
    %v690 = vpack.c.b16 %v676, %v675
    %v691 = vpack.c.b16 %v678, %v677
    %v692 = vpack.c.b16 %v680, %v679
    %v693 = vpack.c.b16 %v682, %v681
    %v694 = vpack.c.b16 %v684, %v683
    %v695 = vpack.c.b16 %v686, %v685
    %v696 = vpack.c.b16 %v688, %v687
    %705 = vmatpush.bf16.msra.mxu0 %v696
    %706 = vmatpush.bf16.msra.mxu0 %v695
    %707 = vmatpush.bf16.msra.mxu0 %v694
    %708 = vmatpush.bf16.msra.mxu0 %v693
    %709 = vmatpush.bf16.msra.mxu0 %v692
    %710 = vmatpush.bf16.msra.mxu0 %v691
    %711 = vmatpush.bf16.msra.mxu0 %v690
    %712 = vmatpush.bf16.msra.mxu0 %v689
    %713 = vmatmul.bf16.gmra.mxu0 %v636
    %v714 = vpop.f32.mrf.mxu0
    %v715 = vadd.f32 %v655, %v714
    %v716 = vpop.f32.mrf.mxu0
    %717 = vdwg.mxu0
    %v718 = vtanh.pop %v715
    %v719 = vld [vmem:[%s7] sm:$0xff]
    %v720 = vmul.f32 %v718, %v719
    %v721 = vpack.c.bf16 %v720, %v720
    %v722 = vld [vmem:[%s18] sm:$0xf]
    %v723 = vld [vmem:[%s18 + $0x4] sm:$0xf]
    %v724 = vld [vmem:[%s18 + $0x8] sm:$0xf]
    %v725 = vld [vmem:[%s18 + $0xc] sm:$0xf]
    %v726 = vld [vmem:[%s18 + $0x10] sm:$0xf]
    %v727 = vld [vmem:[%s18 + $0x14] sm:$0xf]
    %v728 = vld [vmem:[%s18 + $0x18] sm:$0xf]
    %v729 = vld [vmem:[%s18 + $0x1c] sm:$0xf]
    %v730 = vld [vmem:[%s18 + $0x20] sm:$0xf]
    %v731 = vld [vmem:[%s18 + $0x24] sm:$0xf]
    %v732 = vld [vmem:[%s18 + $0x28] sm:$0xf]
    %v733 = vld [vmem:[%s18 + $0x2c] sm:$0xf]
    %v734 = vld [vmem:[%s18 + $0x30] sm:$0xf]
    %v735 = vld [vmem:[%s18 + $0x34] sm:$0xf]
    %v736 = vld [vmem:[%s18 + $0x38] sm:$0xf]
    %v737 = vld [vmem:[%s18 + $0x3c] sm:$0xf]
    %v738 = vld [vmem:[%s19] sm:$0x1]
    %v740 = vperm.slane %v738, 0
    %v758 = vunpack.c.l.b16 %v722
    %v759 = vunpack.c.l.b16 %v723
    %v760 = vunpack.c.l.b16 %v724
    %v761 = vunpack.c.l.b16 %v725
    %v762 = vunpack.c.l.b16 %v726
    %v763 = vunpack.c.l.b16 %v727
    %v764 = vunpack.c.l.b16 %v728
    %v765 = vunpack.c.l.b16 %v729
    %v766 = vunpack.c.l.b16 %v730
    %v767 = vunpack.c.l.b16 %v731
    %v768 = vunpack.c.l.b16 %v732
    %v769 = vunpack.c.l.b16 %v733
    %v770 = vunpack.c.l.b16 %v734
    %v771 = vunpack.c.l.b16 %v735
    %v772 = vunpack.c.l.b16 %v736
    %v773 = vunpack.c.l.b16 %v737
    %v774 = vpack.c.b16 %v759, %v758
    %v775 = vpack.c.b16 %v761, %v760
    %v776 = vpack.c.b16 %v763, %v762
    %v777 = vpack.c.b16 %v765, %v764
    %v778 = vpack.c.b16 %v767, %v766
    %v779 = vpack.c.b16 %v769, %v768
    %v780 = vpack.c.b16 %v771, %v770
    %v781 = vpack.c.b16 %v773, %v772
    %790 = vmatpush.bf16.msra.mxu0 %v781
    %791 = vmatpush.bf16.msra.mxu0 %v780
    %792 = vmatpush.bf16.msra.mxu0 %v779
    %793 = vmatpush.bf16.msra.mxu0 %v778
    %794 = vmatpush.bf16.msra.mxu0 %v777
    %795 = vmatpush.bf16.msra.mxu0 %v776
    %796 = vmatpush.bf16.msra.mxu0 %v775
    %797 = vmatpush.bf16.msra.mxu0 %v774
    %798 = vmatmul.bf16.gmra.mxu0 %v721
    %v799 = vpop.f32.mrf.mxu0
    %v800 = vadd.f32 %v740, %v799
    %v801 = vpop.f32.mrf.mxu0
    %802 = vdwg.mxu0
    %vm803 = vcmp.gt.f32.partialorder %v800, 0.0
    %v804 = vmin.f32 %v800, 0.0
    %v805 = vmul.f32 %v804, 1.442695
    %v806 = vpow.pop %v805
    %v807 = vsub.f32 %v806, 1.0
    %v808 = vsel %vm803, %v800, %v807
    %v809 = vld [vmem:[%s8] sm:$0xff]
    %v810 = vmul.f32 %v808, %v809
    %v811 = vpack.c.bf16 %v810, %v810
    %v812 = vld [vmem:[%s20] sm:$0xff]
    %v813 = vld [vmem:[%s20 + $0x8] sm:$0xff]
    %v814 = vld [vmem:[%s20 + $0x10] sm:$0xff]
    %v815 = vld [vmem:[%s20 + $0x18] sm:$0xff]
    %v816 = vld [vmem:[%s20 + $0x20] sm:$0xff]
    %v817 = vld [vmem:[%s20 + $0x28] sm:$0xff]
    %v818 = vld [vmem:[%s20 + $0x30] sm:$0xff]
    %v819 = vld [vmem:[%s20 + $0x38] sm:$0xff]
    %v820 = vld [vmem:[%s20 + $0x40] sm:$0xff]
    %v821 = vld [vmem:[%s20 + $0x48] sm:$0xff]
    %v822 = vld [vmem:[%s20 + $0x50] sm:$0xff]
    %v823 = vld [vmem:[%s20 + $0x58] sm:$0xff]
    %v824 = vld [vmem:[%s20 + $0x60] sm:$0xff]
    %v825 = vld [vmem:[%s20 + $0x68] sm:$0xff]
    %v826 = vld [vmem:[%s20 + $0x70] sm:$0xff]
    %v827 = vld [vmem:[%s20 + $0x78] sm:$0xff]
    %v828 = vld [vmem:[%s21] sm:$0x3]
    %v830 = vperm.slane %v828, 0
    %v831 = vperm.slane %v828, 1
    %v850 = vunpack.c.l.b16 %v812
    %v851 = vunpack.c.h.b16 %v812
    %v852 = vunpack.c.l.b16 %v813
    %v853 = vunpack.c.h.b16 %v813
    %v854 = vunpack.c.l.b16 %v814
    %v855 = vunpack.c.h.b16 %v814
    %v856 = vunpack.c.l.b16 %v815
    %v857 = vunpack.c.h.b16 %v815
    %v858 = vunpack.c.l.b16 %v816
    %v859 = vunpack.c.h.b16 %v816
    %v860 = vunpack.c.l.b16 %v817
    %v861 = vunpack.c.h.b16 %v817
    %v862 = vunpack.c.l.b16 %v818
    %v863 = vunpack.c.h.b16 %v818
    %v864 = vunpack.c.l.b16 %v819
    %v865 = vunpack.c.h.b16 %v819
    %v866 = vunpack.c.l.b16 %v820
    %v867 = vunpack.c.h.b16 %v820
    %v868 = vunpack.c.l.b16 %v821
    %v869 = vunpack.c.h.b16 %v821
    %v870 = vunpack.c.l.b16 %v822
    %v871 = vunpack.c.h.b16 %v822
    %v872 = vunpack.c.l.b16 %v823
    %v873 = vunpack.c.h.b16 %v823
    %v874 = vunpack.c.l.b16 %v824
    %v875 = vunpack.c.h.b16 %v824
    %v876 = vunpack.c.l.b16 %v825
    %v877 = vunpack.c.h.b16 %v825
    %v878 = vunpack.c.l.b16 %v826
    %v879 = vunpack.c.h.b16 %v826
    %v880 = vunpack.c.l.b16 %v827
    %v881 = vunpack.c.h.b16 %v827
    %v882 = vpack.c.b16 %v852, %v850
    %v883 = vpack.c.b16 %v853, %v851
    %v884 = vpack.c.b16 %v856, %v854
    %v885 = vpack.c.b16 %v857, %v855
    %v886 = vpack.c.b16 %v860, %v858
    %v887 = vpack.c.b16 %v861, %v859
    %v888 = vpack.c.b16 %v864, %v862
    %v889 = vpack.c.b16 %v865, %v863
    %v890 = vpack.c.b16 %v868, %v866
    %v891 = vpack.c.b16 %v869, %v867
    %v892 = vpack.c.b16 %v872, %v870
    %v893 = vpack.c.b16 %v873, %v871
    %v894 = vpack.c.b16 %v876, %v874
    %v895 = vpack.c.b16 %v877, %v875
    %v896 = vpack.c.b16 %v880, %v878
    %v897 = vpack.c.b16 %v881, %v879
    %914 = vmatpush.bf16.msra.mxu0 %v896
    %915 = vmatpush.bf16.msra.mxu0 %v894
    %916 = vmatpush.bf16.msra.mxu0 %v892
    %917 = vmatpush.bf16.msra.mxu0 %v890
    %918 = vmatpush.bf16.msra.mxu0 %v888
    %919 = vmatpush.bf16.msra.mxu0 %v886
    %920 = vmatpush.bf16.msra.mxu0 %v884
    %921 = vmatpush.bf16.msra.mxu0 %v882
    %922 = vmatmul.bf16.gmra.mxu0 %v811
    %v923 = vpop.f32.mrf.mxu0
    %v924 = vadd.f32 %v830, %v923
    %v925 = vpop.f32.mrf.mxu0
    %926 = vdwg.mxu0
    %927 = vmatpush.bf16.msra.mxu0 %v897
    %928 = vmatpush.bf16.msra.mxu0 %v895
    %929 = vmatpush.bf16.msra.mxu0 %v893
    %930 = vmatpush.bf16.msra.mxu0 %v891
    %931 = vmatpush.bf16.msra.mxu0 %v889
    %932 = vmatpush.bf16.msra.mxu0 %v887
    %933 = vmatpush.bf16.msra.mxu0 %v885
    %934 = vmatpush.bf16.msra.mxu0 %v883
    %935 = vmatmul.bf16.gmra.mxu0 %v811
    %v936 = vpop.f32.mrf.mxu0
    %v937 = vadd.f32 %v831, %v936
    %v938 = vpop.f32.mrf.mxu0
    %939 = vdwg.mxu0
    %v940 = vmax.f32 %v924, -18.420681
    %v941 = vmax.f32 %v937, -18.420681
    %v942 = vmin.f32 %v940, 18.420681
    %v943 = vmin.f32 %v941, 18.420681
    %v944 = vand.u32 2147483647, %v942
    %v945 = vand.u32 2147483647, %v943
    %v946 = vsub.f32 0.0, %v944
    %v947 = vsub.f32 0.0, %v945
    %v948 = vmul.f32 %v946, 1.442695
    %v949 = vpow.pop %v948
    %v950 = vmul.f32 %v947, 1.442695
    %v951 = vpow.pop %v950
    %v952 = vadd.f32 %v949, 1.0
    %v953 = vadd.f32 %v951, 1.0
    %v954 = vrcp.pop %v952
    %v955 = vmul.f32 %v952, %v954
    %v956 = vsub.f32 1.0, %v955
    %v957 = vmul.f32 %v954, %v956
    %v958 = vadd.f32 %v954, %v957
    %vm959 = vweird.f32 %v952
    %vm960 = vweird.f32 %v954
    %vm961 = vmor %vm959, %vm960
    %v962 = vsel %vm961, %v954, %v958
    %v963 = vand.u32 2147483647, %v952
    %vm964 = vcmp.eq.f32.partialorder %v963, 8.507059e+37
    %v965 = vand.u32 %v952, 2147483648
    %v966 = vor.u32 1.1754944e-38, %v965
    %v967 = vsel %vm964, %v966, %v962
    %v968 = vmul.f32 1.0, %v967
    %v969 = vrcp.pop %v953
    %v970 = vmul.f32 %v953, %v969
    %v971 = vsub.f32 1.0, %v970
    %v972 = vmul.f32 %v969, %v971
    %v973 = vadd.f32 %v969, %v972
    %vm974 = vweird.f32 %v953
    %vm975 = vweird.f32 %v969
    %vm976 = vmor %vm974, %vm975
    %v977 = vsel %vm976, %v969, %v973
    %v978 = vand.u32 2147483647, %v953
    %vm979 = vcmp.eq.f32.partialorder %v978, 8.507059e+37
    %v980 = vand.u32 %v953, 2147483648
    %v981 = vor.u32 1.1754944e-38, %v980
    %v982 = vsel %vm979, %v981, %v977
    %v983 = vmul.f32 1.0, %v982
    %vm984 = vcmp.ge.f32.partialorder %v942, 0.0
    %vm985 = vcmp.ge.f32.partialorder %v943, 0.0
    %v986 = vmul.f32 %v949, %v968
    %v987 = vmul.f32 %v951, %v983
    %v988 = vsel %vm984, %v968, %v986
    %v989 = vsel %vm985, %v983, %v987
    %v990 = vmax.f32 %v942, 0.0
    %v991 = vmax.f32 %v943, 0.0
    %v992 = vlog2.pop %v952
    %v993 = vmul.f32 %v992, 0.6931472
    %v994 = vlog2.pop %v953
    %v995 = vmul.f32 %v994, 0.6931472
    %v996 = vadd.f32 %v990, %v993
    %v997 = vadd.f32 %v991, %v995
    %v998 = vmul.f32 %v469, %v942
    %v999 = vmul.f32 %v470, %v943
    %v1000 = vsub.f32 %v998, %v996
    %v1001 = vsub.f32 %v999, %v997
    %v1002 = vadd.f32 %v1000, %v1001
    %1003 = vadd.xlane.f32.xlu0 %v1002
    %v1004 = vpop.xlane.xlu0 %1003
    %v1005 = vlaneseq
    %v1006 = vand.u32 %v1005, 127
    %v1007 = vmul.f32 %v444, %v444
    %v1008 = vmul.f32 %v468, %v468
    %v1009 = vadd.f32 %v1007, %v1008
    %v1010 = vadd.f32 %v1008, 1e-08
    %v1011 = vlog2.pop %v1010
    %v1012 = vmul.f32 %v1011, 0.6931472
    %v1013 = vsub.f32 %v1009, %v1012
    %v1014 = vsub.f32 %v1013, 1.0
    %vm1015 = vcmp.lt.s32.totalorder %v1006, 32
    %v1016 = vsel %vm1015, 1, 0
    %vm1017 = vcmp.eq.s32.totalorder %v1016, 1
    %v1018 = vsel %vm1017, %v1014, 0.0
    %1019 = vadd.xlane.f32.xlu0 %v1018
    %v1020 = vpop.xlane.xlu0 %1019
    %v1021 = vmul.f32 %v1020, 0.5
    %v1022 = vld [vmem:[%s4] sm:$0xff]
    %v1023 = vld [vmem:[%s3] sm:$0xff]
    %v1024 = vsub.f32 %v1022, %v1023
    %v1025 = vmul.f32 %v1024, %v1024
    %vm1026 = vcmask 15360
    %v1027 = vsel %vm1026, %v1025, 0.0
    %1028 = vadd.xlane.f32.xlu0 %v1027
    %v1029 = vpop.xlane.xlu0 %1028
    %v1030 = vrcp.pop 2.0
    %v1031 = vmul.f32 2.0, %v1030
    %v1032 = vsub.f32 1.0, %v1031
    %v1033 = vmul.f32 %v1030, %v1032
    %v1034 = vadd.f32 %v1030, %v1033
    %vm1035 = vweird.f32 %v1030
    %v1036 = vsel %vm1035, %v1030, %v1034
    %v1037 = vmul.f32 %v1029, %v1036
    %v1038 = vsub.f32 %v444, %v630
    %v1039 = vmul.f32 %v1038, %v1038
    %1040 = vadd.xlane.f32.xlu0 %v1039
    %v1041 = vpop.xlane.xlu0 %1040
    %v1042 = vmul.f32 %v1041, 0.03125
    %v1043 = vrot.slane %v1004, 4
    %v1044 = vadd.f32 %v1004, %v1043
    %v1045 = vrot.slane %v1044, 2
    %v1046 = vadd.f32 %v1044, %v1045
    %v1047 = vrot.slane %v1046, 1
    %v1048 = vadd.f32 %v1046, %v1047
    %v1049 = vrot.slane %v1021, 4
    %v1050 = vadd.f32 %v1021, %v1049
    %v1051 = vrot.slane %v1050, 2
    %v1052 = vadd.f32 %v1050, %v1051
    %v1053 = vrot.slane %v1052, 1
    %v1054 = vadd.f32 %v1052, %v1053
    %v1055 = vsub.f32 1.0, %v1037
    %v1056 = vmul.f32 %v1042, %v1055
    %v1057 = vrot.slane %v1056, 4
    %v1058 = vadd.f32 %v1056, %v1057
    %v1059 = vrot.slane %v1058, 2
    %v1060 = vadd.f32 %v1058, %v1059
    %v1061 = vrot.slane %v1060, 1
    %v1062 = vadd.f32 %v1060, %v1061
    %v1063 = vmul.f32 %v1037, 60.0
    %v1064 = vsub.f32 %v1063, %v1042
    %v1065 = vmax.f32 %v1064, 0.0
    %v1066 = vmul.f32 %v1065, %v1037
    %v1067 = vrot.slane %v1066, 4
    %v1068 = vadd.f32 %v1066, %v1067
    %v1069 = vrot.slane %v1068, 2
    %v1070 = vadd.f32 %v1068, %v1069
    %v1071 = vrot.slane %v1070, 1
    %v1072 = vadd.f32 %v1070, %v1071
    %1073 = vst [vmem:[#allocation2] sm:$0xff] %v988
    %1074 = vst [vmem:[#allocation2 + $0x8] sm:$0xff] %v989
    %1075 = vst [vmem:[#allocation4] sm:$0xff] %v635
    %v1076 = vlaneseq
    %v1077 = vshrl.u32 %v1076, 7
    %vm1078 = vcmp.eq.s32.totalorder %v1006, 0
    %v1079 = vsel %vm1078, %v1048, 0.0
    %vm1080 = vcmp.eq.s32.totalorder %v1006, 1
    %v1081 = vsel %vm1080, %v1054, 0.0
    %v1082 = vadd.f32 %v1079, %v1081
    %vm1083 = vcmp.eq.s32.totalorder %v1006, 2
    %v1084 = vsel %vm1083, %v1062, 0.0
    %v1085 = vadd.f32 %v1082, %v1084
    %vm1086 = vcmp.eq.s32.totalorder %v1006, 3
    %v1087 = vsel %vm1086, %v1072, 0.0
    %v1088 = vadd.f32 %v1085, %v1087
    %vm1089 = vcmp.eq.s32.totalorder %v1077, 0
    %v1090 = vsel %vm1089, %v1088, 0.0
    %1091 = vst [vmem:[%s24] sm:$0xff] %v1090
    // Predicated region
    $region90: #{vae2_forward.3} parent=1 // pred_check
      _
    $region91: #{vae2_forward.3} parent=1 // pred_check_branch
      %1093 = sbr.rel (0) target = $region93
    $region92: #{vae2_forward.3} parent=1 // pred_region
      %1095 = vsyncadd [#allocation3], 0
      %s1097 = sshll.u32 [#allocation2], 4
      %s1098 = int_to_ptr.vmem [resolvable:$true] %s1097
      %s1099 = sshll.u32 %s22, 4
      %s1100 = int_to_ptr.hbm [resolvable:$true] %s1099
      %1102 = dma.vmem_to_hbm [thread:$0]  %s1098, 256, %s1100, [#allocation3]
    $region93: #{vae2_forward.3} parent=1 // pred_fallthru
      _
    // Predicated region
    $region94: #{vae2_forward.3} parent=1 // pred_check
      _
    $region95: #{vae2_forward.3} parent=1 // pred_check_branch
      %1104 = sbr.rel (0) target = $region97
    $region96: #{vae2_forward.3} parent=1 // pred_region
      %1106 = vsyncadd [#allocation5], 0
      %s1108 = sshll.u32 [#allocation4], 4
      %s1109 = int_to_ptr.vmem [resolvable:$true] %s1108
      %s1110 = sshll.u32 %s23, 4
      %s1111 = int_to_ptr.hbm [resolvable:$true] %s1110
      %1113 = dma.vmem_to_hbm [thread:$0]  %s1109, 128, %s1111, [#allocation5]
    $region97: #{vae2_forward.3} parent=1 // pred_fallthru
      _
    // Predicated region
    $region98: #{vae2_forward.3} parent=1 // pred_check
      _
    $region99: #{vae2_forward.3} parent=1 // pred_check_branch
      %1115 = sbr.rel (0) target = $region101
    $region100: #{vae2_forward.3} parent=1 // pred_region
      _
    $region101: #{vae2_forward.3} parent=1 // pred_fallthru
      _
    // Predicated region
    $region102: #{vae2_forward.3} parent=1 // pred_check
      _
    $region103: #{vae2_forward.3} parent=1 // pred_check_branch
      %1117 = sbr.rel (0) target = $region105
    $region104: #{vae2_forward.3} parent=1 // pred_region
      %1119 = dma.done [#allocation3], 256
    $region105: #{vae2_forward.3} parent=1 // pred_fallthru
      _
    // Predicated region
    $region106: #{vae2_forward.3} parent=1 // pred_check
      _
    $region107: #{vae2_forward.3} parent=1 // pred_check_branch
      %1121 = sbr.rel (0) target = $region109
    $region108: #{vae2_forward.3} parent=1 // pred_region
      %1123 = dma.done [#allocation5], 128
    $region109: #{vae2_forward.3} parent=1 // pred_fallthru
      _
    // Predicated region
    $region110: #{vae2_forward.3} parent=1 // pred_check
      _
    $region111: #{vae2_forward.3} parent=1 // pred_check_branch
      %1125 = sbr.rel (0) target = $region113
    $region112: #{vae2_forward.3} parent=1 // pred_region
      _
    $region113: #{vae2_forward.3} parent=1 // pred_fallthru
      _
    %1126 = vsyncpa [#allocation3], 1
    %1127 = vsyncpa [#allocation5], 1

</llo_original>
